<compile_context>
chip_gen: v7x
topology: tpu7x:2x2x1
jax: 0.10.0
libtpu: 0.0.40
codegen_flags: <defaults>
</compile_context>

<pallas_src>
import functools

import jax
import jax.numpy as jnp
import numpy as np
from jax.experimental import pallas as pl
from jax.experimental.pallas import tpu as pltpu


# ---------------------------------------------------------------------------
# Kernels
# ---------------------------------------------------------------------------

def _attend_and_pool(local, l_emb3, gw, bc, l_valid, out_ref):
    """Shared epilogue: scores -> softmax over L -> weighted pool -> l2norm."""
    tb, L, D = local.shape

    #   score_{b,l} = sum_d l_emb_{b,l,d} * gw_{b,d} + bc
    scores = jnp.sum(l_emb3 * gw[:, None, :], axis=-1) + bc        # (TB, L) f32
    if l_valid < L:     # L was padded up to a sublane multiple -> mask pads
        pos = jax.lax.broadcasted_iota(jnp.int32, (tb, L), 1)
        scores = jnp.where(pos < l_valid, scores, -jnp.inf)

    # softmax over L (dim=1 of the (B, L) weights in the torch code)
    m = jnp.max(scores, axis=-1, keepdims=True)
    e = jnp.exp(scores - m)
    w = e / jnp.sum(e, axis=-1, keepdims=True)                     # (TB, L)

    # weighted sum of the ORIGINAL local features over L (f32 accumulate)
    new_g = jnp.sum(w[:, :, None] * local.astype(jnp.float32), axis=1)

    # l2norm over last dim (SGRAF: X / (sqrt(sum(X^2)) + eps))
    norm = jnp.sqrt(jnp.sum(new_g * new_g, axis=-1, keepdims=True)) + 1e-8
    out_ref[...] = (new_g / norm).astype(out_ref.dtype)


def textsa_kernel(local_ref, g_ref, wl_ref, bl_ref, wg_ref, bg_ref,
                  wc_ref, bc_ref, out_ref, *, l_valid):
    """Fused variant: both Linear+Tanh branches run in-kernel."""
    tb, L, D = local_ref.shape
    mxu_dt = wl_ref.dtype                                          # f32 / bf16

    local = local_ref[...]                                         # (TB, L, D)
    lhs = local.reshape(tb * L, D).astype(mxu_dt)

    # embedding_local: Linear -> Tanh (Dropout = identity in eval mode)
    l_emb = jnp.tanh(
        jnp.dot(lhs, wl_ref[...], preferred_element_type=jnp.float32)
        + bl_ref[...])                                             # (TB*L, D)

    # embedding_global: Linear -> Tanh
    g_emb = jnp.tanh(
        jnp.dot(g_ref[...].astype(mxu_dt), wg_ref[...],
                preferred_element_type=jnp.float32)
        + bg_ref[...])                                             # (TB, D)

    # Fold the (D, 1) common-projection weight into the global branch once.
    gw = g_emb * wc_ref[...]                                       # (TB, D)
    _attend_and_pool(local, l_emb.reshape(tb, L, D), gw, bc_ref[0],
                     l_valid, out_ref)


def textsa_kernel_hoisted(local_ref, gw_ref, wl_ref, bl_ref, bc_ref, out_ref,
                          *, l_valid):
    """Global branch hoisted to the wrapper: gw = tanh(g @ Wg^T + bg) * wc is
    precomputed, so only Wl^T stays VMEM-resident (v5e VMEM-tight config)."""
    tb, L, D = local_ref.shape
    mxu_dt = wl_ref.dtype
    local = local_ref[...]
    lhs = local.reshape(tb * L, D).astype(mxu_dt)
    l_emb = jnp.tanh(
        jnp.dot(lhs, wl_ref[...], preferred_element_type=jnp.float32)
        + bl_ref[...])
    _attend_and_pool(local, l_emb.reshape(tb, L, D), gw_ref[...], bc_ref[0],
                     l_valid, out_ref)


# ---------------------------------------------------------------------------
# Wrapper
# ---------------------------------------------------------------------------

def _select_tb(B, tb_req):
    """Batch tile: sublane-aligned (multiple of 8) unless B < 8, and shrunk so
    the grid keeps >= 2 steps when B allows (v7x megacore sharding)."""
    if B <= 8:
        return B
    tb = max(8, min((tb_req // 8) * 8, (B // 8) * 8))
    if B >= 16:
        tb = min(tb, max(8, ((B // 2) // 8) * 8))
    return tb


def _estimate_vmem_bytes(tb, Lp, D, local_isz, g_isz, w_isz, hoist, buffers):
    # Residents: whole-array weights/biases (single-buffered VMEM).
    resident = D * D * w_isz + D * 4                      # Wl^T + b_l
    if not hoist:
        resident += D * D * w_isz + 2 * D * 4             # Wg^T + b_g + w_c
    # Pipelined tiles.
    tiles = buffers * tb * Lp * D * local_isz             # local
    tiles += buffers * tb * D * g_isz                     # raw_global / gw
    tiles += 2 * tb * D * 4                               # output
    # Elementwise temporaries (l_emb, score product, softmax, pooled rows).
    temps = 3 * tb * Lp * D * 4 + 6 * tb * D * 4
    est = resident + tiles + temps
    return int(max(16 << 20, min(int(est * 1.5) + (2 << 20), 64 << 20)))


def _textsa_pallas(local, gvec, consts, *, tb, l_valid, hoist, buffer_count,
                   vmem_limit_bytes):
    Bc, Lp, D = local.shape
    assert Bc % tb == 0
    vmem = pltpu.MemorySpace.VMEM
    smem = pltpu.MemorySpace.SMEM

    spec_kwargs = {}
    if buffer_count is not None:            # optional deeper pipelining sweep
        spec_kwargs["pipeline_mode"] = pl.Buffered(buffer_count)
    local_spec = pl.BlockSpec((tb, Lp, D), lambda i: (i, 0, 0), **spec_kwargs)
    g_spec = pl.BlockSpec((tb, D), lambda i: (i, 0))

    if hoist:
        kernel = functools.partial(textsa_kernel_hoisted, l_valid=l_valid)
        const_specs = [pl.BlockSpec(memory_space=vmem),   # Wl^T
                       pl.BlockSpec(memory_space=vmem),   # b_l
                       pl.BlockSpec(memory_space=smem)]   # b_c
    else:
        kernel = functools.partial(textsa_kernel, l_valid=l_valid)
        const_specs = ([pl.BlockSpec(memory_space=vmem)] * 5 +   # Wl,bl,Wg,bg,wc
                       [pl.BlockSpec(memory_space=smem)])        # b_c

    if vmem_limit_bytes is None:
        vmem_limit_bytes = _estimate_vmem_bytes(
            tb, Lp, D,
            jnp.dtype(local.dtype).itemsize,
            jnp.dtype(gvec.dtype).itemsize,
            jnp.dtype(consts[0].dtype).itemsize,
            hoist,
            2 if buffer_count is None else buffer_count)

    grid_spec = pltpu.PrefetchScalarGridSpec(
        num_scalar_prefetch=0,
        grid=(Bc // tb,),
        in_specs=[local_spec, g_spec] + const_specs,
        out_specs=pl.BlockSpec((tb, D), lambda i: (i, 0)),
    )
    return pl.pallas_call(
        kernel,
        out_shape=jax.ShapeDtypeStruct((Bc, D), jnp.float32),
        grid_spec=grid_spec,
        compiler_params=pltpu.CompilerParams(
            dimension_semantics=("parallel",),     # shards across v7x TCs
            vmem_limit_bytes=vmem_limit_bytes),
    )(local, gvec, *consts)


def textsa_forward(local, raw_global, params, *, tb=32, mxu_dtype=None,
                   input_dtype=None, hoist_global=False, buffer_count=None,
                   vmem_limit_bytes=None):
    """TextSA forward pass.

    tb:            batch rows per grid step (auto-shrunk: sublane-aligned and
                   >= 2 grid steps when B allows, for v7x megacore).
    mxu_dtype:     matmul weight/LHS dtype.  Default: bfloat16 for D >= 512
                   (halves resident VMEM + MXU passes), float32 otherwise.
                   Accumulation and the elementwise epilogue stay f32.
    input_dtype:   optionally ship local/raw_global narrower (e.g. bf16) to
                   halve the dominant HBM stream on v6e/v7x (adds bf16-level
                   error to the pooled output).
    hoist_global:  precompute gw = tanh(raw_global @ Wg^T + bg) * wc in the
                   wrapper (frees the Wg resident; use when VMEM-tight, v5e).
    buffer_count:  optional pl.Buffered(n) depth for the local-tile stream.
    vmem_limit_bytes: override the footprint-derived scoped-VMEM limit.
    """
    B, L, D = local.shape
    wl_t, bl, wg_t, bg, wc_row, bc = params

    if mxu_dtype is None:
        mxu_dtype = jnp.bfloat16 if D >= 512 else jnp.float32
    mxu_dtype = jnp.dtype(mxu_dtype)

    # Pad L up to a sublane multiple so the in-kernel (tb,L,D)<->(tb*L,D)
    # reshape is a free regrouping; padded positions are masked pre-softmax.
    Lp = ((L + 7) // 8) * 8
    if Lp != L:
        local = jnp.pad(local, ((0, 0), (0, Lp - L), (0, 0)))

    if input_dtype is not None:
        local = local.astype(input_dtype)

    if hoist_global:
        # Tiny (B, D) precompute in f32; deletes the per-step underfilled
        # (tb, D) @ (D, D) matmul and the Wg/bg/wc VMEM residents.
        gvec = jnp.tanh(raw_global @ wg_t + bg[0]) * wc_row[0]
        consts = (wl_t.astype(mxu_dtype), bl, bc)
    else:
        gvec = raw_global.astype(input_dtype) if input_dtype is not None \
            else raw_global
        consts = (wl_t.astype(mxu_dtype), bl, wg_t.astype(mxu_dtype), bg,
                  wc_row, bc)

    tb_eff = _select_tb(B, tb)
    B_main = (B // tb_eff) * tb_eff
    tail = B - B_main

    run = functools.partial(_textsa_pallas, l_valid=L, hoist=hoist_global,
                            buffer_count=buffer_count,
                            vmem_limit_bytes=vmem_limit_bytes)

    if tail == 0:
        return run(local, gvec, consts, tb=tb_eff)
    # No full-tensor jnp.pad: the remainder runs as a second single-step call
    # whose block equals its full batch extent (always a legal block shape).
    out_main = run(local[:B_main], gvec[:B_main], consts, tb=tb_eff)
    out_tail = run(local[B_main:], gvec[B_main:], consts, tb=tail)
    return jnp.concatenate([out_main, out_tail], axis=0)


# ---------------------------------------------------------------------------
# Params / reference
# ---------------------------------------------------------------------------

def init_params(key, embed_dim):
    # Matches TextSA.init_weights: uniform(-r, r), r = sqrt(6/(fan_in+fan_out)),
    # biases = 0.  Linear weights stored pre-transposed: (D_in, D_out).
    k1, k2, k3 = jax.random.split(key, 3)
    r_lin = np.sqrt(6.0) / np.sqrt(embed_dim + embed_dim)
    r_com = np.sqrt(6.0) / np.sqrt(embed_dim + 1)

    wl_t = jax.random.uniform(k1, (embed_dim, embed_dim), jnp.float32,
                              minval=-r_lin, maxval=r_lin)
    wg_t = jax.random.uniform(k2, (embed_dim, embed_dim), jnp.float32,
                              minval=-r_lin, maxval=r_lin)
    # nn.Linear(D, 1) weight has shape (1, D); keep it lane-dense as (1, D).
    wc_row = jax.random.uniform(k3, (1, embed_dim), jnp.float32,
                                minval=-r_com, maxval=r_com)
    bl = jnp.zeros((1, embed_dim), jnp.float32)
    bg = jnp.zeros((1, embed_dim), jnp.float32)
    bc = jnp.zeros((1,), jnp.float32)
    return (wl_t, bl, wg_t, bg, wc_row, bc)


def textsa_reference(local, raw_global, params):
    wl_t, bl, wg_t, bg, wc_row, bc = params
    l_emb = jnp.tanh(local @ wl_t + bl[0])
    g_emb = jnp.tanh(raw_global @ wg_t + bg[0])
    common = l_emb * g_emb[:, None, :]
    weights = jnp.sum(common * wc_row[0], axis=-1) + bc[0]
    weights = jax.nn.softmax(weights, axis=1)
    new_g = jnp.sum(weights[:, :, None] * local, axis=1)
    norm = jnp.sqrt(jnp.sum(new_g * new_g, axis=-1, keepdims=True)) + 1e-8
    return new_g / norm


# ---------------------------------------------------------------------------
# Test
# ---------------------------------------------------------------------------

if __name__ == "__main__":
    B, L, D = 32, 8, 128   # small embed_dim standing in for the real 1024
    key = jax.random.PRNGKey(0)
    k_local, k_param = jax.random.split(key)

    local = jax.random.normal(k_local, (B, L, D), jnp.float32)
    raw_global = jnp.mean(local, axis=1)          # "raw text by averaging words"

    params = init_params(k_param, D)
    ref = textsa_reference(local, raw_global, params)

    # 1) Default path (D < 512 -> f32 MXU); tb auto-shrinks 32 -> 16 so the
    #    grid keeps two parallel steps for v7x megacore.
    out = jax.block_until_ready(textsa_forward(local, raw_global, params))
    assert out.shape == (B, D)
    np.testing.assert_allclose(np.asarray(out), np.asarray(ref),
                               rtol=1e-5, atol=1e-5)

    # 2) Batch not a multiple of the tile: exercises the main+tail split
    #    (no full-tensor pad copy).
    out_small = jax.block_until_ready(
        textsa_forward(local[:10], raw_global[:10], params, tb=16))
    np.testing.assert_allclose(np.asarray(out_small), np.asarray(ref[:10]),
                               rtol=1e-5, atol=1e-5)

    # 3) Sentence length not sublane-aligned: exercises the L-pad + mask path.
    local5 = local[:, :5, :]
    raw_global5 = jnp.mean(local5, axis=1)
    ref5 = textsa_reference(local5, raw_global5, params)
    out5 = jax.block_until_ready(
        textsa_forward(local5, raw_global5, params, tb=16))
    np.testing.assert_allclose(np.asarray(out5), np.asarray(ref5),
                               rtol=1e-5, atol=1e-5)

    # 4) bf16 MXU weights (the default at production D >= 512): f32 accumulate
    #    and f32 elementwise epilogue.
    out_bf16 = jax.block_until_ready(
        textsa_forward(local, raw_global, params, mxu_dtype=jnp.bfloat16))
    np.testing.assert_allclose(np.asarray(out_bf16), np.asarray(ref),
                               rtol=3e-2, atol=3e-2)

    # 5) bf16 inputs + bf16 MXU (v6e/v7x HBM-bound config): halves the
    #    dominant f32 local stream.
    out_bf16_in = jax.block_until_ready(
        textsa_forward(local, raw_global, params, mxu_dtype=jnp.bfloat16,
                       input_dtype=jnp.bfloat16))
    np.testing.assert_allclose(np.asarray(out_bf16_in), np.asarray(ref),
                               rtol=5e-2, atol=5e-2)

    # 6) Hoisted global branch (v5e VMEM-tight config).
    out_hoist = jax.block_until_ready(
        textsa_forward(local, raw_global, params, hoist_global=True))
    np.testing.assert_allclose(np.asarray(out_hoist), np.asarray(ref),
                               rtol=1e-5, atol=1e-5)

    print("KERNEL_OK")
</pallas_src>

<mosaic_0001>
module attributes {stable_mosaic.version = 11 : i64} {
  func.func @textsa_kernel(%arg0: i32, %arg1: memref<16x8x128xf32, #tpu.memory_space<vmem>>, %arg2: memref<16x128xf32, #tpu.memory_space<vmem>>, %arg3: memref<128x128xf32, #tpu.memory_space<vmem>>, %arg4: memref<1x128xf32, #tpu.memory_space<vmem>>, %arg5: memref<128x128xf32, #tpu.memory_space<vmem>>, %arg6: memref<1x128xf32, #tpu.memory_space<vmem>>, %arg7: memref<1x128xf32, #tpu.memory_space<vmem>>, %arg8: memref<1xf32, #tpu.memory_space<smem>>, %arg9: memref<16x128xf32, #tpu.memory_space<vmem>>) attributes {dimension_semantics = [#tpu.dimension_semantics<parallel>], iteration_bounds = array<i64: 2>, scalar_prefetch = 0 : i64, scratch_operands = 0 : i64, tpu.core_type = #tpu.core_type<tc>, window_params = [{transform_indices = @transform_0, window_bounds = array<i64: 16, 8, 128>}, {transform_indices = @transform_1, window_bounds = array<i64: 16, 128>}, {pipeline_mode = #tpu.pipeline_mode<synchronous>, transform_indices = @transform_2, window_bounds = array<i64: 128, 128>}, {pipeline_mode = #tpu.pipeline_mode<synchronous>, transform_indices = @transform_3, window_bounds = array<i64: 1, 128>}, {pipeline_mode = #tpu.pipeline_mode<synchronous>, transform_indices = @transform_4, window_bounds = array<i64: 128, 128>}, {pipeline_mode = #tpu.pipeline_mode<synchronous>, transform_indices = @transform_5, window_bounds = array<i64: 1, 128>}, {pipeline_mode = #tpu.pipeline_mode<synchronous>, transform_indices = @transform_6, window_bounds = array<i64: 1, 128>}, {transform_indices = @transform_7, window_bounds = array<i64: 1>}, {transform_indices = @transform_8, window_bounds = array<i64: 16, 128>}]} {
    %c0 = arith.constant 0 : index
    %c0_0 = arith.constant 0 : index
    %c0_1 = arith.constant 0 : index
    %0 = vector.load %arg1[%c0, %c0_0, %c0_1] : memref<16x8x128xf32, #tpu.memory_space<vmem>>, vector<16x8x128xf32>
    %1 = vector.shape_cast %0 : vector<16x8x128xf32> to vector<128x128xf32>
    %c0_2 = arith.constant 0 : index
    %c0_3 = arith.constant 0 : index
    %2 = vector.load %arg3[%c0_2, %c0_3] : memref<128x128xf32, #tpu.memory_space<vmem>>, vector<128x128xf32>
    %cst = arith.constant dense<0.000000e+00> : vector<128x128xf32>
    %3 = tpu.matmul %1, %2, %cst {dimension_numbers = #tpu.dot_dimension_numbers<[1], [0], [0], [1], [0, 0, 1, 1], [], []>} : vector<128x128xf32>, vector<128x128xf32>, vector<128x128xf32> -> vector<128x128xf32>
    %c0_4 = arith.constant 0 : index
    %c0_5 = arith.constant 0 : index
    %4 = vector.load %arg4[%c0_4, %c0_5] : memref<1x128xf32, #tpu.memory_space<vmem>>, vector<1x128xf32>
    %5 = vector.broadcast %4 : vector<1x128xf32> to vector<128x128xf32>
    %6 = arith.addf %3, %5 : vector<128x128xf32>
    %7 = math.tanh %6 : vector<128x128xf32>
    %c0_6 = arith.constant 0 : index
    %c0_7 = arith.constant 0 : index
    %8 = vector.load %arg2[%c0_6, %c0_7] : memref<16x128xf32, #tpu.memory_space<vmem>>, vector<16x128xf32>
    %c0_8 = arith.constant 0 : index
    %c0_9 = arith.constant 0 : index
    %9 = vector.load %arg5[%c0_8, %c0_9] : memref<128x128xf32, #tpu.memory_space<vmem>>, vector<128x128xf32>
    %cst_10 = arith.constant dense<0.000000e+00> : vector<16x128xf32>
    %10 = tpu.matmul %8, %9, %cst_10 {dimension_numbers = #tpu.dot_dimension_numbers<[1], [0], [0], [1], [0, 0, 1, 1], [], []>} : vector<16x128xf32>, vector<128x128xf32>, vector<16x128xf32> -> vector<16x128xf32>
    %c0_11 = arith.constant 0 : index
    %c0_12 = arith.constant 0 : index
    %11 = vector.load %arg6[%c0_11, %c0_12] : memref<1x128xf32, #tpu.memory_space<vmem>>, vector<1x128xf32>
    %12 = vector.broadcast %11 : vector<1x128xf32> to vector<16x128xf32>
    %13 = arith.addf %10, %12 : vector<16x128xf32>
    %14 = math.tanh %13 : vector<16x128xf32>
    %c0_13 = arith.constant 0 : index
    %c0_14 = arith.constant 0 : index
    %15 = vector.load %arg7[%c0_13, %c0_14] : memref<1x128xf32, #tpu.memory_space<vmem>>, vector<1x128xf32>
    %16 = vector.broadcast %15 : vector<1x128xf32> to vector<16x128xf32>
    %17 = arith.mulf %14, %16 : vector<16x128xf32>
    %18 = vector.shape_cast %7 : vector<128x128xf32> to vector<16x8x128xf32>
    %c0_15 = arith.constant 0 : index
    %19 = memref.load %arg8[%c0_15] : memref<1xf32, #tpu.memory_space<smem>>
    %20 = vector.shape_cast %17 : vector<16x128xf32> to vector<16x1x128xf32>
    %21 = vector.broadcast %20 : vector<16x1x128xf32> to vector<16x8x128xf32>
    %22 = arith.mulf %18, %21 : vector<16x8x128xf32>
    %cst_16 = arith.constant dense<0.000000e+00> : vector<16x8xf32>
    %23 = vector.multi_reduction <add>, %22, %cst_16 [2] : vector<16x8x128xf32> to vector<16x8xf32>
    %24 = vector.broadcast %19 : f32 to vector<16x8xf32>
    %25 = arith.addf %23, %24 : vector<16x8xf32>
    %cst_17 = arith.constant dense<0xFF800000> : vector<16xf32>
    %26 = vector.multi_reduction <maximumf>, %25, %cst_17 [1] : vector<16x8xf32> to vector<16xf32>
    %27 = vector.shape_cast %26 : vector<16xf32> to vector<16x1xf32>
    %28 = vector.broadcast %27 : vector<16x1xf32> to vector<16x8xf32>
    %29 = arith.subf %25, %28 : vector<16x8xf32>
    %30 = math.exp %29 : vector<16x8xf32>
    %cst_18 = arith.constant dense<0.000000e+00> : vector<16xf32>
    %31 = vector.multi_reduction <add>, %30, %cst_18 [1] : vector<16x8xf32> to vector<16xf32>
    %32 = vector.shape_cast %31 : vector<16xf32> to vector<16x1xf32>
    %33 = vector.broadcast %32 : vector<16x1xf32> to vector<16x8xf32>
    %34 = arith.divf %30, %33 : vector<16x8xf32>
    %35 = vector.shape_cast %34 : vector<16x8xf32> to vector<16x8x1xf32>
    %36 = vector.broadcast %35 : vector<16x8x1xf32> to vector<16x8x128xf32>
    %37 = arith.mulf %36, %0 : vector<16x8x128xf32>
    %cst_19 = arith.constant dense<0.000000e+00> : vector<16x128xf32>
    %38 = vector.multi_reduction <add>, %37, %cst_19 [1] : vector<16x8x128xf32> to vector<16x128xf32>
    %39 = arith.mulf %38, %38 : vector<16x128xf32>
    %cst_20 = arith.constant dense<0.000000e+00> : vector<16xf32>
    %40 = vector.multi_reduction <add>, %39, %cst_20 [1] : vector<16x128xf32> to vector<16xf32>
    %41 = vector.shape_cast %40 : vector<16xf32> to vector<16x1xf32>
    %42 = math.sqrt %41 : vector<16x1xf32>
    %cst_21 = arith.constant 9.99999993E-9 : f32
    %43 = vector.broadcast %cst_21 : f32 to vector<16x1xf32>
    %44 = arith.addf %42, %43 : vector<16x1xf32>
    %45 = vector.broadcast %44 : vector<16x1xf32> to vector<16x128xf32>
    %46 = arith.divf %38, %45 : vector<16x128xf32>
    %c0_22 = arith.constant 0 : index
    %c0_23 = arith.constant 0 : index
    %47 = vector.load %arg9[%c0_22, %c0_23] : memref<16x128xf32, #tpu.memory_space<vmem>>, vector<16x128xf32>
    tpu.vector_store %arg9[%c0_22, %c0_23], %46 {strides = array<i32>} : memref<16x128xf32, #tpu.memory_space<vmem>>, vector<16x128xf32>,
    return
  }
  func.func @transform_0(%arg0: i32) -> (i32, i32, i32) {
    %c0_i32 = arith.constant 0 : i32
    %c0_i32_0 = arith.constant 0 : i32
    %c0_i32_1 = arith.constant 0 : i32
    return %arg0, %c0_i32, %c0_i32_0 : i32, i32, i32
  }
  func.func @transform_1(%arg0: i32) -> (i32, i32) {
    %c0_i32 = arith.constant 0 : i32
    %c0_i32_0 = arith.constant 0 : i32
    return %arg0, %c0_i32 : i32, i32
  }
  func.func @transform_2(%arg0: i32) -> (i32, i32) {
    %c0_i32 = arith.constant 0 : i32
    %c0_i32_0 = arith.constant 0 : i32
    %c0_i32_1 = arith.constant 0 : i32
    return %c0_i32, %c0_i32_0 : i32, i32
  }
  func.func @transform_3(%arg0: i32) -> (i32, i32) {
    %c0_i32 = arith.constant 0 : i32
    %c0_i32_0 = arith.constant 0 : i32
    %c0_i32_1 = arith.constant 0 : i32
    return %c0_i32, %c0_i32_0 : i32, i32
  }
  func.func @transform_4(%arg0: i32) -> (i32, i32) {
    %c0_i32 = arith.constant 0 : i32
    %c0_i32_0 = arith.constant 0 : i32
    %c0_i32_1 = arith.constant 0 : i32
    return %c0_i32, %c0_i32_0 : i32, i32
  }
  func.func @transform_5(%arg0: i32) -> (i32, i32) {
    %c0_i32 = arith.constant 0 : i32
    %c0_i32_0 = arith.constant 0 : i32
    %c0_i32_1 = arith.constant 0 : i32
    return %c0_i32, %c0_i32_0 : i32, i32
  }
  func.func @transform_6(%arg0: i32) -> (i32, i32) {
    %c0_i32 = arith.constant 0 : i32
    %c0_i32_0 = arith.constant 0 : i32
    %c0_i32_1 = arith.constant 0 : i32
    return %c0_i32, %c0_i32_0 : i32, i32
  }
  func.func @transform_7(%arg0: i32) -> i32 {
    %c0_i32 = arith.constant 0 : i32
    %c0_i32_0 = arith.constant 0 : i32
    return %c0_i32 : i32
  }
  func.func @transform_8(%arg0: i32) -> (i32, i32) {
    %c0_i32 = arith.constant 0 : i32
    %c0_i32_0 = arith.constant 0 : i32
    return %arg0, %c0_i32 : i32, i32
  }
}

</mosaic_0001>

<llo_original>
// kernel: tpu_custom_call.1
$region0: #{tpu_custom_call.1}
  #allocation0 [shape = 'u32[]', space=smem, size = 0x4, offset = 0x4, fixed_abs, tag = 'smem constant byte address 0x4 - core index']
  #allocation1 [shape = 'u32[144,128]{1,0:T(1,128)}', space=vmem, size = 0x12000, scoped, tag = 'internal scratch']
  #allocation2 [shape = 'f32[1]{0:T(128)S(6)}', space=smem, size = 0x200, scoped, tag = 'scoped memory for tpu_custom_call.1']
  %s0 = inlined_call_operand.hbm [shape: f32[32,8,128], index: 0, kind: input, shape index: {}]
  %s1 = inlined_call_operand.hbm [shape: f32[32,128], index: 1, kind: input, shape index: {}]
  %s2 = inlined_call_operand.hbm [shape: f32[128,128], index: 2, kind: input, shape index: {}]
  %s3 = inlined_call_operand.vmem [shape: f32[1,128], index: 3, kind: input, shape index: {}]
  %s4 = inlined_call_operand.hbm [shape: f32[128,128], index: 4, kind: input, shape index: {}]
  %s5 = inlined_call_operand.vmem [shape: f32[1,128], index: 5, kind: input, shape index: {}]
  %s6 = inlined_call_operand.vmem [shape: f32[1,128], index: 6, kind: input, shape index: {}]
  %s7 = inlined_call_operand.<no memory space> [shape: f32[1], index: 7, kind: input, shape index: {}]
  %s8 = inlined_call_operand.hbm [shape: f32[32,128], index: 8, kind: output, shape index: {}]
  %s9 = sld [smem:[#allocation0]]
  $region81: #{tpu_custom_call.1} parent=0
    _
  %s11 = ssub.s32 1, %s9
  %s12 = scalar_select 0, %s11, %s9
  %13 = sst [smem:[#allocation2]] %s7
  $region1: #{tpu_custom_call.1} parent=0
    #allocation3 [shape = 'u8[131072]{0}', space=vmem, size = 0x20000, scoped, tag = 'input window, operand 0']
    #allocation4 [shape = 's32[2]{0}', space=sflag, size = 0x8, scoped, tag = 'scoped memory for tpu_custom_call.1']
    #allocation5 [shape = 's32[2]{0}', space=sflag, size = 0x8, scoped, tag = 'scoped memory for tpu_custom_call.1']
    #allocation6 [shape = 'u8[16384]{0}', space=vmem, size = 0x4000, scoped, tag = 'input window, operand 1']
    #allocation7 [shape = 's32[2]{0}', space=sflag, size = 0x8, scoped, tag = 'scoped memory for tpu_custom_call.1']
    #allocation8 [shape = 'u8[65536]{0}', space=vmem, size = 0x10000, scoped, tag = 'input window, operand 2, single buffered']
    #allocation9 [shape = 'u8[65536]{0}', space=vmem, size = 0x10000, scoped, tag = 'input window, operand 4, single buffered']
    #allocation10 [shape = 's32[1]{0}', space=sflag, size = 0x4, scoped, tag = 'scoped memory for tpu_custom_call.1']
    #allocation11 [shape = 'u8[16384]{0}', space=vmem, size = 0x4000, scoped, tag = 'output window, operand 0']
    %14 = vsyncpa [#allocation4], 0
    %s15 = scalar_lea.sflag [#allocation4], 1
    %16 = vsyncpa %s15, 0
    %17 = vsyncpa [#allocation7], 0
    %s18 = scalar_lea.sflag [#allocation7], 1
    %19 = vsyncpa %s18, 0
    %20 = vsyncpa [#allocation10], 0
    %21 = vsyncpa [#allocation5], 0
    %s22 = scalar_lea.sflag [#allocation5], 1
    %23 = vsyncpa %s22, 0
    loop: start=0, step=1, limit=4
    $region2: #{tpu_custom_call.1} parent=1 // loop_pre_header
      _
    $region3: #{tpu_custom_call.1} parent=1 // loop_header
      %s25 = sphi 0, %s29
      %p26 = scmp.ge.s32.totalorder %s25, 4
      %s35 = sphi 0, %s37
      %s38 = sphi 0, %s35
      %s39 = sphi 0, %s38
      %s55 = sphi 0, %s39
      %s61 = sphi 0, %s63
      %s64 = sphi 0, %s61
      %s65 = sphi 0, %s64
      %s81 = sphi 0, %s65
      %s85 = sphi 0, %s85
      %s87 = sphi 0, %s85
      %s88 = sphi 0, %s87
      %s102 = sphi 0, %s88
      %s106 = sphi 0, %s106
      %s108 = sphi 0, %s106
      %s109 = sphi 0, %s108
      %s123 = sphi 0, %s109
      %s127 = sphi 0, %s127
      %s129 = sphi 0, %s127
      %s130 = sphi 0, %s129
      %s144 = sphi 0, %s130
      %s148 = sphi 0, %s148
      %s150 = sphi 0, %s148
      %s151 = sphi 0, %s150
      %s165 = sphi 0, %s151
      %s169 = sphi 0, %s169
      %s171 = sphi 0, %s169
      %s172 = sphi 0, %s171
      %s186 = sphi 0, %s172
      %s190 = sphi 0, %s190
      %s192 = sphi 0, %s190
      %s193 = sphi 0, %s192
      %s207 = sphi 0, %s193
      %s213 = sphi 0, %s215
      %s216 = sphi 0, %s213
      %s217 = sphi 0, %s216
      %s233 = sphi 0, %s217
    $region4: #{tpu_custom_call.1} parent=1 // loop_header_branch
      %28 = sbr.rel (%p26) target = $region8
    $region5: #{tpu_custom_call.1} parent=1 // loop_body
      %s30 = ssub.s32 %s25, 1
      %s31 = ssub.s32 %s25, 2
      %s32 = sadd.s32 %s25, 1
      %s33 = ssub.s32 %s25, %s32
      %p34 = scmp.eq.s32.totalorder %s33, 0
      %s36 = sadd.s32 %s35, 1
      %s37 = scalar_select %p34, %s35, %s36
      %p40 = pneg %p34
      %p41 = scmp.eq.s32.totalorder %s25, 1
      %p42 = por %p40, %p41
      %p43 = scmp.ne.s32.totalorder %s35, %s38
      %p44 = scmp.eq.s32.totalorder %s25, 0
      %p45 = por %p43, %p44
      %p46 = scmp.ne.s32.totalorder %s35, %s38
      %p47 = scmp.eq.s32.totalorder %s30, 1
      %p48 = por %p46, %p47
      %p49 = scmp.ne.s32.totalorder %s38, %s39
      %p50 = scmp.eq.s32.totalorder %s30, 0
      %p51 = por %p49, %p50
      %p52 = scmp.ne.s32.totalorder %s38, %s39
      %p53 = scmp.eq.s32.totalorder %s31, 1
      %p54 = por %p52, %p53
      %p56 = scmp.ne.s32.totalorder %s39, %s55
      %p57 = scmp.eq.s32.totalorder %s31, 0
      %p58 = por %p56, %p57
      %s59 = ssub.s32 %s25, %s32
      %p60 = scmp.eq.s32.totalorder %s59, 0
      %s62 = sadd.s32 %s61, 1
      %s63 = scalar_select %p60, %s61, %s62
      %p66 = pneg %p60
      %p67 = scmp.eq.s32.totalorder %s25, 1
      %p68 = por %p66, %p67
      %p69 = scmp.ne.s32.totalorder %s61, %s64
      %p70 = scmp.eq.s32.totalorder %s25, 0
      %p71 = por %p69, %p70
      %p72 = scmp.ne.s32.totalorder %s61, %s64
      %p73 = scmp.eq.s32.totalorder %s30, 1
      %p74 = por %p72, %p73
      %p75 = scmp.ne.s32.totalorder %s64, %s65
      %p76 = scmp.eq.s32.totalorder %s30, 0
      %p77 = por %p75, %p76
      %p78 = scmp.ne.s32.totalorder %s64, %s65
      %p79 = scmp.eq.s32.totalorder %s31, 1
      %p80 = por %p78, %p79
      %p82 = scmp.ne.s32.totalorder %s65, %s81
      %p83 = scmp.eq.s32.totalorder %s31, 0
      %p84 = por %p82, %p83
      %s86 = sadd.s32 %s85, 1
      %p89 = scmp.eq.s32.totalorder %s25, 1
      %p90 = scmp.ne.s32.totalorder %s85, %s87
      %p91 = scmp.eq.s32.totalorder %s25, 0
      %p92 = por %p90, %p91
      %p93 = scmp.ne.s32.totalorder %s85, %s87
      %p94 = scmp.eq.s32.totalorder %s30, 1
      %p95 = por %p93, %p94
      %p96 = scmp.ne.s32.totalorder %s87, %s88
      %p97 = scmp.eq.s32.totalorder %s30, 0
      %p98 = por %p96, %p97
      %p99 = scmp.ne.s32.totalorder %s87, %s88
      %p100 = scmp.eq.s32.totalorder %s31, 1
      %p101 = por %p99, %p100
      %p103 = scmp.ne.s32.totalorder %s88, %s102
      %p104 = scmp.eq.s32.totalorder %s31, 0
      %p105 = por %p103, %p104
      %s107 = sadd.s32 %s106, 1
      %p110 = scmp.eq.s32.totalorder %s25, 1
      %p111 = scmp.ne.s32.totalorder %s106, %s108
      %p112 = scmp.eq.s32.totalorder %s25, 0
      %p113 = por %p111, %p112
      %p114 = scmp.ne.s32.totalorder %s106, %s108
      %p115 = scmp.eq.s32.totalorder %s30, 1
      %p116 = por %p114, %p115
      %p117 = scmp.ne.s32.totalorder %s108, %s109
      %p118 = scmp.eq.s32.totalorder %s30, 0
      %p119 = por %p117, %p118
      %p120 = scmp.ne.s32.totalorder %s108, %s109
      %p121 = scmp.eq.s32.totalorder %s31, 1
      %p122 = por %p120, %p121
      %p124 = scmp.ne.s32.totalorder %s109, %s123
      %p125 = scmp.eq.s32.totalorder %s31, 0
      %p126 = por %p124, %p125
      %s128 = sadd.s32 %s127, 1
      %p131 = scmp.eq.s32.totalorder %s25, 1
      %p132 = scmp.ne.s32.totalorder %s127, %s129
      %p133 = scmp.eq.s32.totalorder %s25, 0
      %p134 = por %p132, %p133
      %p135 = scmp.ne.s32.totalorder %s127, %s129
      %p136 = scmp.eq.s32.totalorder %s30, 1
      %p137 = por %p135, %p136
      %p138 = scmp.ne.s32.totalorder %s129, %s130
      %p139 = scmp.eq.s32.totalorder %s30, 0
      %p140 = por %p138, %p139
      %p141 = scmp.ne.s32.totalorder %s129, %s130
      %p142 = scmp.eq.s32.totalorder %s31, 1
      %p143 = por %p141, %p142
      %p145 = scmp.ne.s32.totalorder %s130, %s144
      %p146 = scmp.eq.s32.totalorder %s31, 0
      %p147 = por %p145, %p146
      %s149 = sadd.s32 %s148, 1
      %p152 = scmp.eq.s32.totalorder %s25, 1
      %p153 = scmp.ne.s32.totalorder %s148, %s150
      %p154 = scmp.eq.s32.totalorder %s25, 0
      %p155 = por %p153, %p154
      %p156 = scmp.ne.s32.totalorder %s148, %s150
      %p157 = scmp.eq.s32.totalorder %s30, 1
      %p158 = por %p156, %p157
      %p159 = scmp.ne.s32.totalorder %s150, %s151
      %p160 = scmp.eq.s32.totalorder %s30, 0
      %p161 = por %p159, %p160
      %p162 = scmp.ne.s32.totalorder %s150, %s151
      %p163 = scmp.eq.s32.totalorder %s31, 1
      %p164 = por %p162, %p163
      %p166 = scmp.ne.s32.totalorder %s151, %s165
      %p167 = scmp.eq.s32.totalorder %s31, 0
      %p168 = por %p166, %p167
      %s170 = sadd.s32 %s169, 1
      %p173 = scmp.eq.s32.totalorder %s25, 1
      %p174 = scmp.ne.s32.totalorder %s169, %s171
      %p175 = scmp.eq.s32.totalorder %s25, 0
      %p176 = por %p174, %p175
      %p177 = scmp.ne.s32.totalorder %s169, %s171
      %p178 = scmp.eq.s32.totalorder %s30, 1
      %p179 = por %p177, %p178
      %p180 = scmp.ne.s32.totalorder %s171, %s172
      %p181 = scmp.eq.s32.totalorder %s30, 0
      %p182 = por %p180, %p181
      %p183 = scmp.ne.s32.totalorder %s171, %s172
      %p184 = scmp.eq.s32.totalorder %s31, 1
      %p185 = por %p183, %p184
      %p187 = scmp.ne.s32.totalorder %s172, %s186
      %p188 = scmp.eq.s32.totalorder %s31, 0
      %p189 = por %p187, %p188
      %s191 = sadd.s32 %s190, 1
      %p194 = scmp.eq.s32.totalorder %s25, 1
      %p195 = scmp.ne.s32.totalorder %s190, %s192
      %p196 = scmp.eq.s32.totalorder %s25, 0
      %p197 = por %p195, %p196
      %p198 = scmp.ne.s32.totalorder %s190, %s192
      %p199 = scmp.eq.s32.totalorder %s30, 1
      %p200 = por %p198, %p199
      %p201 = scmp.ne.s32.totalorder %s192, %s193
      %p202 = scmp.eq.s32.totalorder %s30, 0
      %p203 = por %p201, %p202
      %p204 = scmp.ne.s32.totalorder %s192, %s193
      %p205 = scmp.eq.s32.totalorder %s31, 1
      %p206 = por %p204, %p205
      %p208 = scmp.ne.s32.totalorder %s193, %s207
      %p209 = scmp.eq.s32.totalorder %s31, 0
      %p210 = por %p208, %p209
      %s211 = ssub.s32 %s25, %s32
      %p212 = scmp.eq.s32.totalorder %s211, 0
      %s214 = sadd.s32 %s213, 1
      %s215 = scalar_select %p212, %s213, %s214
      %p218 = pneg %p212
      %p219 = scmp.eq.s32.totalorder %s25, 1
      %p220 = por %p218, %p219
      %p221 = scmp.ne.s32.totalorder %s213, %s216
      %p222 = scmp.eq.s32.totalorder %s25, 0
      %p223 = por %p221, %p222
      %p224 = scmp.ne.s32.totalorder %s213, %s216
      %p225 = scmp.eq.s32.totalorder %s30, 1
      %p226 = por %p224, %p225
      %p227 = scmp.ne.s32.totalorder %s216, %s217
      %p228 = scmp.eq.s32.totalorder %s30, 0
      %p229 = por %p227, %p228
      %p230 = scmp.ne.s32.totalorder %s216, %s217
      %p231 = scmp.eq.s32.totalorder %s31, 1
      %p232 = por %p230, %p231
      %p234 = scmp.ne.s32.totalorder %s217, %s233
      %p235 = scmp.eq.s32.totalorder %s31, 0
      %p236 = por %p234, %p235
      %p237 = scmp.le.s32.totalorder 1, %s25
      %p238 = scmp.lt.s32.totalorder %s25, 3
      %p239 = pnand %p237, %p238
      %p240 = pneg %p239
      // Predicated region
      $region9: #{tpu_custom_call.1} parent=5 // pred_check
        _
      $region10: #{tpu_custom_call.1} parent=5 // pred_check_branch
        %242 = sbr.rel (%p239) target = $region12
      $region11: #{tpu_custom_call.1} parent=5 // pred_region
        %s243 = ssub.s32 %s25, 1
        // Predicated region
        $region13: #{tpu_custom_call.1} parent=11 // pred_check
          %p244 = pneg %p98
        $region14: #{tpu_custom_call.1} parent=11 // pred_check_branch
          %246 = sbr.rel (%p244) target = $region16
        $region15: #{tpu_custom_call.1} parent=11 // pred_region
          %s248 = ssub.s32 2048, 2048
          %249 = vsyncadd [#allocation7], %s248
          %s250 = sshll.u32 [#allocation8], 4
          %s251 = int_to_ptr.vmem [resolvable:$true] %s250
          %256 = dma.hbm_to_vmem [thread:$0]  %s2, 2048, %s251, [#allocation7], 128, 128, 8
        $region16: #{tpu_custom_call.1} parent=11 // pred_fallthru
          _
        // Predicated region
        $region17: #{tpu_custom_call.1} parent=11 // pred_check
          %p257 = pneg %p119
        $region18: #{tpu_custom_call.1} parent=11 // pred_check_branch
          %259 = sbr.rel (%p257) target = $region20
        $region19: #{tpu_custom_call.1} parent=11 // pred_region
          _
        $region20: #{tpu_custom_call.1} parent=11 // pred_fallthru
          _
        // Predicated region
        $region21: #{tpu_custom_call.1} parent=11 // pred_check
          %p260 = pneg %p140
        $region22: #{tpu_custom_call.1} parent=11 // pred_check_branch
          %262 = sbr.rel (%p260) target = $region24
        $region23: #{tpu_custom_call.1} parent=11 // pred_region
          %s264 = ssub.s32 2048, 2048
          %265 = vsyncadd [#allocation10], %s264
          %s266 = sshll.u32 [#allocation9], 4
          %s267 = int_to_ptr.vmem [resolvable:$true] %s266
          %272 = dma.hbm_to_vmem [thread:$0]  %s4, 2048, %s267, [#allocation10], 128, 128, 8
        $region24: #{tpu_custom_call.1} parent=11 // pred_fallthru
          _
        // Predicated region
        $region25: #{tpu_custom_call.1} parent=11 // pred_check
          %p273 = pneg %p161
        $region26: #{tpu_custom_call.1} parent=11 // pred_check_branch
          %275 = sbr.rel (%p273) target = $region28
        $region27: #{tpu_custom_call.1} parent=11 // pred_region
          _
        $region28: #{tpu_custom_call.1} parent=11 // pred_fallthru
          _
        // Predicated region
        $region29: #{tpu_custom_call.1} parent=11 // pred_check
          %p276 = pneg %p182
        $region30: #{tpu_custom_call.1} parent=11 // pred_check_branch
          %278 = sbr.rel (%p276) target = $region32
        $region31: #{tpu_custom_call.1} parent=11 // pred_region
          _
        $region32: #{tpu_custom_call.1} parent=11 // pred_fallthru
          _
        // Predicated region
        $region33: #{tpu_custom_call.1} parent=11 // pred_check
          %p279 = pneg %p203
        $region34: #{tpu_custom_call.1} parent=11 // pred_check_branch
          %281 = sbr.rel (%p279) target = $region36
        $region35: #{tpu_custom_call.1} parent=11 // pred_region
          _
        $region36: #{tpu_custom_call.1} parent=11 // pred_fallthru
          _
      $region12: #{tpu_custom_call.1} parent=5 // pred_fallthru
        _
      %p282 = scmp.lt.s32.totalorder %s25, 2
      // Predicated region
      $region37: #{tpu_custom_call.1} parent=5 // pred_check
        %p283 = pneg %p282
      $region38: #{tpu_custom_call.1} parent=5 // pred_check_branch
        %285 = sbr.rel (%p283) target = $region40
      $region39: #{tpu_custom_call.1} parent=5 // pred_region
        // Predicated region
        $region41: #{tpu_custom_call.1} parent=39 // pred_check
          %p286 = pneg %p45
        $region42: #{tpu_custom_call.1} parent=39 // pred_check_branch
          %288 = sbr.rel (%p286) target = $region44
        $region43: #{tpu_custom_call.1} parent=39 // pred_region
          %s289 = sand.u32 %s35, 1
          %s290 = scalar_lea.sflag [#allocation4], %s289
          %s291 = sand.u32 %s35, 1
          %s292 = smul.addr %s291, 128
          %s293 = scalar_lea.vmem [#allocation3], %s292
          %s294 = smul.u32 16, %s25
          %s296 = ssub.s32 2048, 2048
          %297 = vsyncadd %s290, %s296
          %s298 = smul.addr %s294, 128
          %s299 = scalar_lea.hbm %s0, %s298
          %s300 = sshll.u32 %s293, 4
          %s301 = int_to_ptr.vmem [resolvable:$true] %s300
          %306 = dma.hbm_to_vmem [thread:$0]  %s299, 2048, %s301, %s290, 128, 128, 8
        $region44: #{tpu_custom_call.1} parent=39 // pred_fallthru
          _
        // Predicated region
        $region45: #{tpu_custom_call.1} parent=39 // pred_check
          %p307 = pneg %p71
        $region46: #{tpu_custom_call.1} parent=39 // pred_check_branch
          %309 = sbr.rel (%p307) target = $region48
        $region47: #{tpu_custom_call.1} parent=39 // pred_region
          %s310 = sand.u32 %s25, 1
          %s311 = scalar_lea.sflag [#allocation7], %s310
          %s312 = sand.u32 %s61, 1
          %s313 = smul.addr %s312, 16
          %s314 = scalar_lea.vmem [#allocation6], %s313
          %s315 = smul.u32 2, %s25
          %s317 = ssub.s32 256, 256
          %318 = vsyncadd %s311, %s317
          %s319 = smul.addr %s315, 128
          %s320 = scalar_lea.hbm %s1, %s319
          %s321 = sshll.u32 %s314, 4
          %s322 = int_to_ptr.vmem [resolvable:$true] %s321
          %327 = dma.hbm_to_vmem [thread:$0]  %s320, 256, %s322, %s311, 128, 128, 8
        $region48: #{tpu_custom_call.1} parent=39 // pred_fallthru
          _
      $region40: #{tpu_custom_call.1} parent=5 // pred_fallthru
        _
      %p328 = scmp.le.s32.totalorder 1, %s25
      %p329 = scmp.lt.s32.totalorder %s25, 3
      %p330 = pnand %p328, %p329
      %p331 = pneg %p330
      // Predicated region
      $region49: #{tpu_custom_call.1} parent=5 // pred_check
        _
      $region50: #{tpu_custom_call.1} parent=5 // pred_check_branch
        %333 = sbr.rel (%p330) target = $region52
      $region51: #{tpu_custom_call.1} parent=5 // pred_region
        %s334 = ssub.s32 %s25, 1
        %s335 = sand.u32 %s38, 1
        %s336 = scalar_lea.sflag [#allocation4], %s335
        %s337 = sand.u32 %s38, 1
        %s338 = smul.addr %s337, 128
        %s339 = scalar_lea.vmem [#allocation3], %s338
        // Predicated region
        $region53: #{tpu_custom_call.1} parent=51 // pred_check
          %p340 = pneg %p51
        $region54: #{tpu_custom_call.1} parent=51 // pred_check_branch
          %342 = sbr.rel (%p340) target = $region56
        $region55: #{tpu_custom_call.1} parent=51 // pred_region
          %343 = dma.done %s336, 2048
        $region56: #{tpu_custom_call.1} parent=51 // pred_fallthru
          _
        %s344 = sand.u32 %s30, 1
        %s345 = scalar_lea.sflag [#allocation7], %s344
        %s346 = sand.u32 %s64, 1
        %s347 = smul.addr %s346, 16
        %s348 = scalar_lea.vmem [#allocation6], %s347
        // Predicated region
        $region57: #{tpu_custom_call.1} parent=51 // pred_check
          %p349 = pneg %p77
        $region58: #{tpu_custom_call.1} parent=51 // pred_check_branch
          %351 = sbr.rel (%p349) target = $region60
        $region59: #{tpu_custom_call.1} parent=51 // pred_region
          %352 = dma.done %s345, 256
        $region60: #{tpu_custom_call.1} parent=51 // pred_fallthru
          _
        // Predicated region
        $region61: #{tpu_custom_call.1} parent=51 // pred_check
          %p353 = pneg %p98
        $region62: #{tpu_custom_call.1} parent=51 // pred_check_branch
          %355 = sbr.rel (%p353) target = $region64
        $region63: #{tpu_custom_call.1} parent=51 // pred_region
          %356 = dma.done [#allocation7], 2048
        $region64: #{tpu_custom_call.1} parent=51 // pred_fallthru
          _
        // Predicated region
        $region65: #{tpu_custom_call.1} parent=51 // pred_check
          %p357 = pneg %p140
        $region66: #{tpu_custom_call.1} parent=51 // pred_check_branch
          %359 = sbr.rel (%p357) target = $region68
        $region67: #{tpu_custom_call.1} parent=51 // pred_region
          %360 = dma.done [#allocation10], 2048
        $region68: #{tpu_custom_call.1} parent=51 // pred_fallthru
          _
        %s361 = sand.u32 %s38, 1
        %s362 = scalar_lea.sflag [#allocation4], %s361
        %s363 = sand.u32 %s38, 1
        %s364 = smul.addr %s363, 128
        %s365 = scalar_lea.vmem [#allocation3], %s364
        %p366 = pneg %p51
        %p367 = pneg %p48
        %s368 = sand.u32 %s30, 1
        %s369 = scalar_lea.sflag [#allocation7], %s368
        %s370 = sand.u32 %s64, 1
        %s371 = smul.addr %s370, 16
        %s372 = scalar_lea.vmem [#allocation6], %s371
        %p373 = pneg %p77
        %p374 = pneg %p74
        %p375 = pneg %p98
        %p376 = pneg %p95
        %p377 = pneg %p119
        %p378 = pneg %p116
        %p379 = pneg %p140
        %p380 = pneg %p137
        %p381 = pneg %p161
        %p382 = pneg %p158
        %p383 = pneg %p182
        %p384 = pneg %p179
        %p385 = pneg %p203
        %p386 = pneg %p200
        %p387 = pneg %p229
        %p388 = pneg %p226
        %s389 = sand.u32 %s216, 1
        %s390 = scalar_lea.sflag [#allocation5], %s389
        %s391 = sand.u32 %s216, 1
        %s392 = smul.addr %s391, 16
        %s393 = scalar_lea.vmem [#allocation11], %s392
        %s394 = smul.u32 16, %s30
        %s395 = smul.u32 2, %s30
        %s396 = smul.u32 2, %s30
        %v397 = vld [vmem:[%s339] sm:$0xff]
        %v398 = vld [vmem:[%s339 + $0x8] sm:$0xff]
        %v399 = vld [vmem:[%s339 + $0x10] sm:$0xff]
        %v400 = vld [vmem:[%s339 + $0x18] sm:$0xff]
        %v401 = vld [vmem:[%s339 + $0x20] sm:$0xff]
        %v402 = vld [vmem:[%s339 + $0x28] sm:$0xff]
        %v403 = vld [vmem:[%s339 + $0x30] sm:$0xff]
        %v404 = vld [vmem:[%s339 + $0x38] sm:$0xff]
        %v405 = vld [vmem:[%s339 + $0x40] sm:$0xff]
        %v406 = vld [vmem:[%s339 + $0x48] sm:$0xff]
        %v407 = vld [vmem:[%s339 + $0x50] sm:$0xff]
        %v408 = vld [vmem:[%s339 + $0x58] sm:$0xff]
        %v409 = vld [vmem:[%s339 + $0x60] sm:$0xff]
        %v410 = vld [vmem:[%s339 + $0x68] sm:$0xff]
        %v411 = vld [vmem:[%s339 + $0x70] sm:$0xff]
        %v412 = vld [vmem:[%s339 + $0x78] sm:$0xff]
        %v413 = vld [vmem:[#allocation8] sm:$0xff]
        %v414 = vld [vmem:[#allocation8 + $0x8] sm:$0xff]
        %v415 = vld [vmem:[#allocation8 + $0x10] sm:$0xff]
        %v416 = vld [vmem:[#allocation8 + $0x18] sm:$0xff]
        %v417 = vld [vmem:[#allocation8 + $0x20] sm:$0xff]
        %v418 = vld [vmem:[#allocation8 + $0x28] sm:$0xff]
        %v419 = vld [vmem:[#allocation8 + $0x30] sm:$0xff]
        %v420 = vld [vmem:[#allocation8 + $0x38] sm:$0xff]
        %v421 = vld [vmem:[#allocation8 + $0x40] sm:$0xff]
        %v422 = vld [vmem:[#allocation8 + $0x48] sm:$0xff]
        %v423 = vld [vmem:[#allocation8 + $0x50] sm:$0xff]
        %v424 = vld [vmem:[#allocation8 + $0x58] sm:$0xff]
        %v425 = vld [vmem:[#allocation8 + $0x60] sm:$0xff]
        %v426 = vld [vmem:[#allocation8 + $0x68] sm:$0xff]
        %v427 = vld [vmem:[#allocation8 + $0x70] sm:$0xff]
        %v428 = vld [vmem:[#allocation8 + $0x78] sm:$0xff]
        %v429 = vld [vmem:[%s3] sm:$0x1]
        %v431 = vlaneseq
        %v432 = vshrl.u32 %v431, 7
        %v433 = vsub.s32 0, %v432
        %v434 = vrot.slane %v429, %v433
        %436 = vmatprep.subr.mxu0 0.0
        %437 = vmatpush1.msra.mxu0 %v413
        %438 = vmatprep.subr.mxu0 0.0
        %439 = vmatpush1.msra.mxu0 %v414
        %440 = vmatprep.subr.mxu0 0.0
        %441 = vmatpush1.msra.mxu0 %v415
        %442 = vmatprep.subr.mxu0 0.0
        %443 = vmatpush1.msra.mxu0 %v416
        %444 = vmatprep.subr.mxu0 0.0
        %445 = vmatpush1.msra.mxu0 %v417
        %446 = vmatprep.subr.mxu0 0.0
        %447 = vmatpush1.msra.mxu0 %v418
        %448 = vmatprep.subr.mxu0 0.0
        %449 = vmatpush1.msra.mxu0 %v419
        %450 = vmatprep.subr.mxu0 0.0
        %451 = vmatpush1.msra.mxu0 %v420
        %452 = vmatprep.subr.mxu0 0.0
        %453 = vmatpush1.msra.mxu0 %v421
        %454 = vmatprep.subr.mxu0 0.0
        %455 = vmatpush1.msra.mxu0 %v422
        %456 = vmatprep.subr.mxu0 0.0
        %457 = vmatpush1.msra.mxu0 %v423
        %458 = vmatprep.subr.mxu0 0.0
        %459 = vmatpush1.msra.mxu0 %v424
        %460 = vmatprep.subr.mxu0 0.0
        %461 = vmatpush1.msra.mxu0 %v425
        %462 = vmatprep.subr.mxu0 0.0
        %463 = vmatpush1.msra.mxu0 %v426
        %464 = vmatprep.subr.mxu0 0.0
        %465 = vmatpush1.msra.mxu0 %v427
        %466 = vmatprep.subr.mxu0 0.0
        %467 = vmatpush1.msra.mxu0 %v428
        %468 = vmatprep.subr.mxu0 0.0
        %469 = vmatpush1.msra.mxu0 0.0
        %470 = vmatprep.subr.mxu0 0.0
        %471 = vmatpush1.msra.mxu0 0.0
        %472 = vmatprep.subr.mxu0 0.0
        %473 = vmatpush1.msra.mxu0 0.0
        %474 = vmatprep.subr.mxu0 0.0
        %475 = vmatpush1.msra.mxu0 0.0
        %476 = vmatprep.subr.mxu0 0.0
        %477 = vmatpush1.msra.mxu0 0.0
        %478 = vmatprep.subr.mxu0 0.0
        %479 = vmatpush1.msra.mxu0 0.0
        %480 = vmatprep.subr.mxu0 0.0
        %481 = vmatpush1.msra.mxu0 0.0
        %482 = vmatprep.subr.mxu0 0.0
        %483 = vmatpush1.msra.mxu0 0.0
        %484 = vmatprep.subr.mxu0 0.0
        %485 = vmatpush1.msra.mxu0 0.0
        %486 = vmatprep.subr.mxu0 0.0
        %487 = vmatpush1.msra.mxu0 0.0
        %488 = vmatprep.subr.mxu0 0.0
        %489 = vmatpush1.msra.mxu0 0.0
        %490 = vmatprep.subr.mxu0 0.0
        %491 = vmatpush1.msra.mxu0 0.0
        %492 = vmatprep.subr.mxu0 0.0
        %493 = vmatpush1.msra.mxu0 0.0
        %494 = vmatprep.subr.mxu0 0.0
        %495 = vmatpush1.msra.mxu0 0.0
        %496 = vmatprep.subr.mxu0 0.0
        %497 = vmatpush1.msra.mxu0 0.0
        %498 = vmatprep.subr.mxu0 0.0
        %499 = vmatpush1.msra.mxu0 0.0
        %500 = vmatprep.mubr.f32.mxu0 0.0
        %501 = vmatmul.mubr.f32.gmra.mrb[0].mxu0 %v397
        %v502 = vpop.f32.mrb[0].mxu0
        %v503 = vadd.f32 %v434, %v502
        %v504 = vpop.f32.mrb[0].mxu0
        %505 = vmatprep.mubr.f32.mxu0 0.0
        %506 = vmatmul.mubr.f32.gmra.mrb[0].mxu0 %v398
        %v507 = vpop.f32.mrb[0].mxu0
        %v508 = vadd.f32 %v434, %v507
        %v509 = vpop.f32.mrb[0].mxu0
        %510 = vmatprep.mubr.f32.mxu0 0.0
        %511 = vmatmul.mubr.f32.gmra.mrb[0].mxu0 %v399
        %v512 = vpop.f32.mrb[0].mxu0
        %v513 = vadd.f32 %v434, %v512
        %v514 = vpop.f32.mrb[0].mxu0
        %515 = vmatprep.mubr.f32.mxu0 0.0
        %516 = vmatmul.mubr.f32.gmra.mrb[0].mxu0 %v400
        %v517 = vpop.f32.mrb[0].mxu0
        %v518 = vadd.f32 %v434, %v517
        %v519 = vpop.f32.mrb[0].mxu0
        %520 = vmatprep.mubr.f32.mxu0 0.0
        %521 = vmatmul.mubr.f32.gmra.mrb[0].mxu0 %v401
        %v522 = vpop.f32.mrb[0].mxu0
        %v523 = vadd.f32 %v434, %v522
        %v524 = vpop.f32.mrb[0].mxu0
        %525 = vmatprep.mubr.f32.mxu0 0.0
        %526 = vmatmul.mubr.f32.gmra.mrb[0].mxu0 %v402
        %v527 = vpop.f32.mrb[0].mxu0
        %v528 = vadd.f32 %v434, %v527
        %v529 = vpop.f32.mrb[0].mxu0
        %530 = vmatprep.mubr.f32.mxu0 0.0
        %531 = vmatmul.mubr.f32.gmra.mrb[0].mxu0 %v403
        %v532 = vpop.f32.mrb[0].mxu0
        %v533 = vadd.f32 %v434, %v532
        %v534 = vpop.f32.mrb[0].mxu0
        %535 = vmatprep.mubr.f32.mxu0 0.0
        %536 = vmatmul.mubr.f32.gmra.mrb[0].mxu0 %v404
        %v537 = vpop.f32.mrb[0].mxu0
        %v538 = vadd.f32 %v434, %v537
        %v539 = vpop.f32.mrb[0].mxu0
        %540 = vmatprep.mubr.f32.mxu0 0.0
        %541 = vmatmul.mubr.f32.gmra.mrb[0].mxu0 %v405
        %v542 = vpop.f32.mrb[0].mxu0
        %v543 = vadd.f32 %v434, %v542
        %v544 = vpop.f32.mrb[0].mxu0
        %545 = vmatprep.mubr.f32.mxu0 0.0
        %546 = vmatmul.mubr.f32.gmra.mrb[0].mxu0 %v406
        %v547 = vpop.f32.mrb[0].mxu0
        %v548 = vadd.f32 %v434, %v547
        %v549 = vpop.f32.mrb[0].mxu0
        %550 = vmatprep.mubr.f32.mxu0 0.0
        %551 = vmatmul.mubr.f32.gmra.mrb[0].mxu0 %v407
        %v552 = vpop.f32.mrb[0].mxu0
        %v553 = vadd.f32 %v434, %v552
        %v554 = vpop.f32.mrb[0].mxu0
        %555 = vmatprep.mubr.f32.mxu0 0.0
        %556 = vmatmul.mubr.f32.gmra.mrb[0].mxu0 %v408
        %v557 = vpop.f32.mrb[0].mxu0
        %v558 = vadd.f32 %v434, %v557
        %v559 = vpop.f32.mrb[0].mxu0
        %560 = vmatprep.mubr.f32.mxu0 0.0
        %561 = vmatmul.mubr.f32.gmra.mrb[0].mxu0 %v409
        %v562 = vpop.f32.mrb[0].mxu0
        %v563 = vadd.f32 %v434, %v562
        %v564 = vpop.f32.mrb[0].mxu0
        %565 = vmatprep.mubr.f32.mxu0 0.0
        %566 = vmatmul.mubr.f32.gmra.mrb[0].mxu0 %v410
        %v567 = vpop.f32.mrb[0].mxu0
        %v568 = vadd.f32 %v434, %v567
        %v569 = vpop.f32.mrb[0].mxu0
        %570 = vmatprep.mubr.f32.mxu0 0.0
        %571 = vmatmul.mubr.f32.gmra.mrb[0].mxu0 %v411
        %v572 = vpop.f32.mrb[0].mxu0
        %v573 = vadd.f32 %v434, %v572
        %v574 = vpop.f32.mrb[0].mxu0
        %575 = vmatprep.mubr.f32.mxu0 0.0
        %576 = vmatmul.mubr.f32.gmra.mrb[0].mxu0 %v412
        %v577 = vpop.f32.mrb[0].mxu0
        %v578 = vadd.f32 %v434, %v577
        %v579 = vpop.f32.mrb[0].mxu0
        %580 = vdwg.mxu0
        %v581 = vtanh.pop %v503
        %v582 = vtanh.pop %v508
        %v583 = vtanh.pop %v513
        %v584 = vtanh.pop %v518
        %v585 = vtanh.pop %v523
        %v586 = vtanh.pop %v528
        %v587 = vtanh.pop %v533
        %v588 = vtanh.pop %v538
        %v589 = vtanh.pop %v543
        %v590 = vtanh.pop %v548
        %v591 = vtanh.pop %v553
        %v592 = vtanh.pop %v558
        %v593 = vtanh.pop %v563
        %v594 = vtanh.pop %v568
        %v595 = vtanh.pop %v573
        %v596 = vtanh.pop %v578
        %v597 = vld [vmem:[%s348] sm:$0xff]
        %v598 = vld [vmem:[%s348 + $0x8] sm:$0xff]
        %v599 = vld [vmem:[#allocation9] sm:$0xff]
        %v600 = vld [vmem:[#allocation9 + $0x8] sm:$0xff]
        %v601 = vld [vmem:[#allocation9 + $0x10] sm:$0xff]
        %v602 = vld [vmem:[#allocation9 + $0x18] sm:$0xff]
        %v603 = vld [vmem:[#allocation9 + $0x20] sm:$0xff]
        %v604 = vld [vmem:[#allocation9 + $0x28] sm:$0xff]
        %v605 = vld [vmem:[#allocation9 + $0x30] sm:$0xff]
        %v606 = vld [vmem:[#allocation9 + $0x38] sm:$0xff]
        %v607 = vld [vmem:[#allocation9 + $0x40] sm:$0xff]
        %v608 = vld [vmem:[#allocation9 + $0x48] sm:$0xff]
        %v609 = vld [vmem:[#allocation9 + $0x50] sm:$0xff]
        %v610 = vld [vmem:[#allocation9 + $0x58] sm:$0xff]
        %v611 = vld [vmem:[#allocation9 + $0x60] sm:$0xff]
        %v612 = vld [vmem:[#allocation9 + $0x68] sm:$0xff]
        %v613 = vld [vmem:[#allocation9 + $0x70] sm:$0xff]
        %v614 = vld [vmem:[#allocation9 + $0x78] sm:$0xff]
        %v615 = vld [vmem:[%s5] sm:$0x1]
        %v617 = vlaneseq
        %v618 = vshrl.u32 %v617, 7
        %v619 = vsub.s32 0, %v618
        %v620 = vrot.slane %v615, %v619
        %622 = vmatprep.subr.mxu0 0.0
        %623 = vmatpush1.msra.mxu0 %v599
        %624 = vmatprep.subr.mxu0 0.0
        %625 = vmatpush1.msra.mxu0 %v600
        %626 = vmatprep.subr.mxu0 0.0
        %627 = vmatpush1.msra.mxu0 %v601
        %628 = vmatprep.subr.mxu0 0.0
        %629 = vmatpush1.msra.mxu0 %v602
        %630 = vmatprep.subr.mxu0 0.0
        %631 = vmatpush1.msra.mxu0 %v603
        %632 = vmatprep.subr.mxu0 0.0
        %633 = vmatpush1.msra.mxu0 %v604
        %634 = vmatprep.subr.mxu0 0.0
        %635 = vmatpush1.msra.mxu0 %v605
        %636 = vmatprep.subr.mxu0 0.0
        %637 = vmatpush1.msra.mxu0 %v606
        %638 = vmatprep.subr.mxu0 0.0
        %639 = vmatpush1.msra.mxu0 %v607
        %640 = vmatprep.subr.mxu0 0.0
        %641 = vmatpush1.msra.mxu0 %v608
        %642 = vmatprep.subr.mxu0 0.0
        %643 = vmatpush1.msra.mxu0 %v609
        %644 = vmatprep.subr.mxu0 0.0
        %645 = vmatpush1.msra.mxu0 %v610
        %646 = vmatprep.subr.mxu0 0.0
        %647 = vmatpush1.msra.mxu0 %v611
        %648 = vmatprep.subr.mxu0 0.0
        %649 = vmatpush1.msra.mxu0 %v612
        %650 = vmatprep.subr.mxu0 0.0
        %651 = vmatpush1.msra.mxu0 %v613
        %652 = vmatprep.subr.mxu0 0.0
        %653 = vmatpush1.msra.mxu0 %v614
        %654 = vmatprep.subr.mxu0 0.0
        %655 = vmatpush1.msra.mxu0 0.0
        %656 = vmatprep.subr.mxu0 0.0
        %657 = vmatpush1.msra.mxu0 0.0
        %658 = vmatprep.subr.mxu0 0.0
        %659 = vmatpush1.msra.mxu0 0.0
        %660 = vmatprep.subr.mxu0 0.0
        %661 = vmatpush1.msra.mxu0 0.0
        %662 = vmatprep.subr.mxu0 0.0
        %663 = vmatpush1.msra.mxu0 0.0
        %664 = vmatprep.subr.mxu0 0.0
        %665 = vmatpush1.msra.mxu0 0.0
        %666 = vmatprep.subr.mxu0 0.0
        %667 = vmatpush1.msra.mxu0 0.0
        %668 = vmatprep.subr.mxu0 0.0
        %669 = vmatpush1.msra.mxu0 0.0
        %670 = vmatprep.subr.mxu0 0.0
        %671 = vmatpush1.msra.mxu0 0.0
        %672 = vmatprep.subr.mxu0 0.0
        %673 = vmatpush1.msra.mxu0 0.0
        %674 = vmatprep.subr.mxu0 0.0
        %675 = vmatpush1.msra.mxu0 0.0
        %676 = vmatprep.subr.mxu0 0.0
        %677 = vmatpush1.msra.mxu0 0.0
        %678 = vmatprep.subr.mxu0 0.0
        %679 = vmatpush1.msra.mxu0 0.0
        %680 = vmatprep.subr.mxu0 0.0
        %681 = vmatpush1.msra.mxu0 0.0
        %682 = vmatprep.subr.mxu0 0.0
        %683 = vmatpush1.msra.mxu0 0.0
        %684 = vmatprep.subr.mxu0 0.0
        %685 = vmatpush1.msra.mxu0 0.0
        %686 = vmatprep.mubr.f32.mxu0 0.0
        %687 = vmatmul.mubr.f32.gmra.mrb[0].mxu0 %v597
        %v688 = vpop.f32.mrb[0].mxu0
        %v689 = vadd.f32 %v620, %v688
        %v690 = vpop.f32.mrb[0].mxu0
        %691 = vmatprep.mubr.f32.mxu0 0.0
        %692 = vmatmul.mubr.f32.gmra.mrb[0].mxu0 %v598
        %v693 = vpop.f32.mrb[0].mxu0
        %v694 = vadd.f32 %v620, %v693
        %v695 = vpop.f32.mrb[0].mxu0
        %696 = vdwg.mxu0
        %v697 = vtanh.pop %v689
        %v698 = vtanh.pop %v694
        %v699 = vld [vmem:[%s6] sm:$0x1]
        %v701 = vlaneseq
        %v702 = vshrl.u32 %v701, 7
        %v703 = vsub.s32 0, %v702
        %v704 = vrot.slane %v699, %v703
        %v706 = vmul.f32 %v697, %v704
        %v707 = vmul.f32 %v698, %v704
        %s708 = sld [smem:[#allocation2]]
        %v711 = vcombine.high %v706, %v706
        %v713 = vunpack.c.l.s4 1966171168
        %v714 = vunpack.c.0.s8 %v713
        %v715 = vlaneseq
        %v716 = vshrl.u32 %v715, 7
        %v717 = vsub.s32 %v714, %v716
        %v718 = vrot.slane %v706, %v717
        %v720 = vunpack.c.l.s4 1966171168
        %v721 = vunpack.c.0.s8 %v720
        %v722 = vlaneseq
        %v723 = vshrl.u32 %v722, 7
        %v724 = vsub.s32 %v721, %v723
        %v725 = vrot.slane %v711, %v724
        %v726 = vcombine.high %v718, %v718
        %v727 = vcombine.high %v725, %v725
        %v729 = vunpack.c.l.s4 1966171168
        %v730 = vunpack.c.0.s8 %v729
        %v731 = vlaneseq
        %v732 = vshrl.u32 %v731, 7
        %v733 = vsub.s32 %v730, %v732
        %v734 = vrot.slane %v718, %v733
        %v736 = vunpack.c.l.s4 1966171168
        %v737 = vunpack.c.0.s8 %v736
        %v738 = vlaneseq
        %v739 = vshrl.u32 %v738, 7
        %v740 = vsub.s32 %v737, %v739
        %v741 = vrot.slane %v725, %v740
        %v743 = vunpack.c.l.s4 1966171168
        %v744 = vunpack.c.0.s8 %v743
        %v745 = vlaneseq
        %v746 = vshrl.u32 %v745, 7
        %v747 = vsub.s32 %v744, %v746
        %v748 = vrot.slane %v726, %v747
        %v750 = vunpack.c.l.s4 1966171168
        %v751 = vunpack.c.0.s8 %v750
        %v752 = vlaneseq
        %v753 = vshrl.u32 %v752, 7
        %v754 = vsub.s32 %v751, %v753
        %v755 = vrot.slane %v727, %v754
        %v756 = vcombine.high %v734, %v734
        %v757 = vcombine.high %v741, %v741
        %v758 = vcombine.high %v748, %v748
        %v759 = vcombine.high %v755, %v755
        %v760 = vcombine.high %v707, %v707
        %v762 = vunpack.c.l.s4 1966171168
        %v763 = vunpack.c.0.s8 %v762
        %v764 = vlaneseq
        %v765 = vshrl.u32 %v764, 7
        %v766 = vsub.s32 %v763, %v765
        %v767 = vrot.slane %v707, %v766
        %v769 = vunpack.c.l.s4 1966171168
        %v770 = vunpack.c.0.s8 %v769
        %v771 = vlaneseq
        %v772 = vshrl.u32 %v771, 7
        %v773 = vsub.s32 %v770, %v772
        %v774 = vrot.slane %v760, %v773
        %v775 = vcombine.high %v767, %v767
        %v776 = vcombine.high %v774, %v774
        %v778 = vunpack.c.l.s4 1966171168
        %v779 = vunpack.c.0.s8 %v778
        %v780 = vlaneseq
        %v781 = vshrl.u32 %v780, 7
        %v782 = vsub.s32 %v779, %v781
        %v783 = vrot.slane %v767, %v782
        %v785 = vunpack.c.l.s4 1966171168
        %v786 = vunpack.c.0.s8 %v785
        %v787 = vlaneseq
        %v788 = vshrl.u32 %v787, 7
        %v789 = vsub.s32 %v786, %v788
        %v790 = vrot.slane %v774, %v789
        %v792 = vunpack.c.l.s4 1966171168
        %v793 = vunpack.c.0.s8 %v792
        %v794 = vlaneseq
        %v795 = vshrl.u32 %v794, 7
        %v796 = vsub.s32 %v793, %v795
        %v797 = vrot.slane %v775, %v796
        %v799 = vunpack.c.l.s4 1966171168
        %v800 = vunpack.c.0.s8 %v799
        %v801 = vlaneseq
        %v802 = vshrl.u32 %v801, 7
        %v803 = vsub.s32 %v800, %v802
        %v804 = vrot.slane %v776, %v803
        %v805 = vcombine.high %v783, %v783
        %v806 = vcombine.high %v790, %v790
        %v807 = vcombine.high %v797, %v797
        %v808 = vcombine.high %v804, %v804
        %v809 = vlaneseq
        %v810 = vshrl.u32 %v809, 7
        %v811 = vsub.s32 0, %v810
        %v812 = vrot.slane %v734, %v811
        %v813 = vlaneseq
        %v814 = vshrl.u32 %v813, 7
        %v815 = vsub.s32 0, %v814
        %v816 = vrot.slane %v748, %v815
        %v817 = vlaneseq
        %v818 = vshrl.u32 %v817, 7
        %v819 = vsub.s32 0, %v818
        %v820 = vrot.slane %v756, %v819
        %v821 = vlaneseq
        %v822 = vshrl.u32 %v821, 7
        %v823 = vsub.s32 0, %v822
        %v824 = vrot.slane %v758, %v823
        %v825 = vlaneseq
        %v826 = vshrl.u32 %v825, 7
        %v827 = vsub.s32 0, %v826
        %v828 = vrot.slane %v741, %v827
        %v829 = vlaneseq
        %v830 = vshrl.u32 %v829, 7
        %v831 = vsub.s32 0, %v830
        %v832 = vrot.slane %v755, %v831
        %v833 = vlaneseq
        %v834 = vshrl.u32 %v833, 7
        %v835 = vsub.s32 0, %v834
        %v836 = vrot.slane %v757, %v835
        %v837 = vlaneseq
        %v838 = vshrl.u32 %v837, 7
        %v839 = vsub.s32 0, %v838
        %v840 = vrot.slane %v759, %v839
        %v841 = vlaneseq
        %v842 = vshrl.u32 %v841, 7
        %v843 = vsub.s32 0, %v842
        %v844 = vrot.slane %v783, %v843
        %v845 = vlaneseq
        %v846 = vshrl.u32 %v845, 7
        %v847 = vsub.s32 0, %v846
        %v848 = vrot.slane %v797, %v847
        %v849 = vlaneseq
        %v850 = vshrl.u32 %v849, 7
        %v851 = vsub.s32 0, %v850
        %v852 = vrot.slane %v805, %v851
        %v853 = vlaneseq
        %v854 = vshrl.u32 %v853, 7
        %v855 = vsub.s32 0, %v854
        %v856 = vrot.slane %v807, %v855
        %v857 = vlaneseq
        %v858 = vshrl.u32 %v857, 7
        %v859 = vsub.s32 0, %v858
        %v860 = vrot.slane %v790, %v859
        %v861 = vlaneseq
        %v862 = vshrl.u32 %v861, 7
        %v863 = vsub.s32 0, %v862
        %v864 = vrot.slane %v804, %v863
        %v865 = vlaneseq
        %v866 = vshrl.u32 %v865, 7
        %v867 = vsub.s32 0, %v866
        %v868 = vrot.slane %v806, %v867
        %v869 = vlaneseq
        %v870 = vshrl.u32 %v869, 7
        %v871 = vsub.s32 0, %v870
        %v872 = vrot.slane %v808, %v871
        %v889 = vmul.f32 %v581, %v812
        %v890 = vmul.f32 %v582, %v816
        %v891 = vmul.f32 %v583, %v820
        %v892 = vmul.f32 %v584, %v824
        %v893 = vmul.f32 %v585, %v828
        %v894 = vmul.f32 %v586, %v832
        %v895 = vmul.f32 %v587, %v836
        %v896 = vmul.f32 %v588, %v840
        %v897 = vmul.f32 %v589, %v844
        %v898 = vmul.f32 %v590, %v848
        %v899 = vmul.f32 %v591, %v852
        %v900 = vmul.f32 %v592, %v856
        %v901 = vmul.f32 %v593, %v860
        %v902 = vmul.f32 %v594, %v864
        %v903 = vmul.f32 %v595, %v868
        %v904 = vmul.f32 %v596, %v872
        %905 = vadd.xlane.f32.xlu0 %v889
        %v906 = vpop.xlane.xlu0 %905
        %907 = vadd.xlane.f32.xlu0 %v890
        %v908 = vpop.xlane.xlu0 %907
        %909 = vadd.xlane.f32.xlu0 %v891
        %v910 = vpop.xlane.xlu0 %909
        %911 = vadd.xlane.f32.xlu0 %v892
        %v912 = vpop.xlane.xlu0 %911
        %913 = vadd.xlane.f32.xlu0 %v893
        %v914 = vpop.xlane.xlu0 %913
        %915 = vadd.xlane.f32.xlu0 %v894
        %v916 = vpop.xlane.xlu0 %915
        %917 = vadd.xlane.f32.xlu0 %v895
        %v918 = vpop.xlane.xlu0 %917
        %919 = vadd.xlane.f32.xlu0 %v896
        %v920 = vpop.xlane.xlu0 %919
        %921 = vadd.xlane.f32.xlu0 %v897
        %v922 = vpop.xlane.xlu0 %921
        %923 = vadd.xlane.f32.xlu0 %v898
        %v924 = vpop.xlane.xlu0 %923
        %925 = vadd.xlane.f32.xlu0 %v899
        %v926 = vpop.xlane.xlu0 %925
        %927 = vadd.xlane.f32.xlu0 %v900
        %v928 = vpop.xlane.xlu0 %927
        %929 = vadd.xlane.f32.xlu0 %v901
        %v930 = vpop.xlane.xlu0 %929
        %931 = vadd.xlane.f32.xlu0 %v902
        %v932 = vpop.xlane.xlu0 %931
        %933 = vadd.xlane.f32.xlu0 %v903
        %v934 = vpop.xlane.xlu0 %933
        %935 = vadd.xlane.f32.xlu0 %v904
        %v936 = vpop.xlane.xlu0 %935
        %v937 = vstv %s708
        %v938 = vadd.f32 %v906, %v937
        %v939 = vadd.f32 %v908, %v937
        %v940 = vadd.f32 %v910, %v937
        %v941 = vadd.f32 %v912, %v937
        %v942 = vadd.f32 %v914, %v937
        %v943 = vadd.f32 %v916, %v937
        %v944 = vadd.f32 %v918, %v937
        %v945 = vadd.f32 %v920, %v937
        %v946 = vadd.f32 %v922, %v937
        %v947 = vadd.f32 %v924, %v937
        %v948 = vadd.f32 %v926, %v937
        %v949 = vadd.f32 %v928, %v937
        %v950 = vadd.f32 %v930, %v937
        %v951 = vadd.f32 %v932, %v937
        %v952 = vadd.f32 %v934, %v937
        %v953 = vadd.f32 %v936, %v937
        %v970 = vlaneseq
        %v971 = vand.u32 %v970, 127
        %v972 = vlaneseq
        %v973 = vshrl.u32 %v972, 7
        %v974 = vsub.s32 %v971, %v973
        %v975 = vrot.slane %v938, %v974
        %v976 = vlaneseq
        %v977 = vshrl.u32 %v976, 7
        %v978 = vsub.s32 %v971, %v977
        %v979 = vrot.slane %v939, %v978
        %v980 = vlaneseq
        %v981 = vshrl.u32 %v980, 7
        %v982 = vsub.s32 %v971, %v981
        %v983 = vrot.slane %v940, %v982
        %v984 = vlaneseq
        %v985 = vshrl.u32 %v984, 7
        %v986 = vsub.s32 %v971, %v985
        %v987 = vrot.slane %v941, %v986
        %v988 = vlaneseq
        %v989 = vshrl.u32 %v988, 7
        %v990 = vsub.s32 %v971, %v989
        %v991 = vrot.slane %v942, %v990
        %v992 = vlaneseq
        %v993 = vshrl.u32 %v992, 7
        %v994 = vsub.s32 %v971, %v993
        %v995 = vrot.slane %v943, %v994
        %v996 = vlaneseq
        %v997 = vshrl.u32 %v996, 7
        %v998 = vsub.s32 %v971, %v997
        %v999 = vrot.slane %v944, %v998
        %v1000 = vlaneseq
        %v1001 = vshrl.u32 %v1000, 7
        %v1002 = vsub.s32 %v971, %v1001
        %v1003 = vrot.slane %v945, %v1002
        %v1004 = vlaneseq
        %v1005 = vshrl.u32 %v1004, 7
        %v1006 = vsub.s32 %v971, %v1005
        %v1007 = vrot.slane %v946, %v1006
        %v1008 = vlaneseq
        %v1009 = vshrl.u32 %v1008, 7
        %v1010 = vsub.s32 %v971, %v1009
        %v1011 = vrot.slane %v947, %v1010
        %v1012 = vlaneseq
        %v1013 = vshrl.u32 %v1012, 7
        %v1014 = vsub.s32 %v971, %v1013
        %v1015 = vrot.slane %v948, %v1014
        %v1016 = vlaneseq
        %v1017 = vshrl.u32 %v1016, 7
        %v1018 = vsub.s32 %v971, %v1017
        %v1019 = vrot.slane %v949, %v1018
        %v1020 = vlaneseq
        %v1021 = vshrl.u32 %v1020, 7
        %v1022 = vsub.s32 %v971, %v1021
        %v1023 = vrot.slane %v950, %v1022
        %v1024 = vlaneseq
        %v1025 = vshrl.u32 %v1024, 7
        %v1026 = vsub.s32 %v971, %v1025
        %v1027 = vrot.slane %v951, %v1026
        %v1028 = vlaneseq
        %v1029 = vshrl.u32 %v1028, 7
        %v1030 = vsub.s32 %v971, %v1029
        %v1031 = vrot.slane %v952, %v1030
        %v1032 = vlaneseq
        %v1033 = vshrl.u32 %v1032, 7
        %v1034 = vsub.s32 %v971, %v1033
        %v1035 = vrot.slane %v953, %v1034
        %vm1036 = vcmask 1041409
        %v1037 = vsel %vm1036, %v979, %v975
        %vm1038 = vcmask 1042434
        %v1039 = vsel %vm1038, %v983, %v1037
        %vm1040 = vcmask 1043459
        %v1041 = vsel %vm1040, %v987, %v1039
        %vm1042 = vcmask 1044484
        %v1043 = vsel %vm1042, %v991, %v1041
        %vm1044 = vcmask 1045509
        %v1045 = vsel %vm1044, %v995, %v1043
        %vm1046 = vcmask 1046534
        %v1047 = vsel %vm1046, %v999, %v1045
        %vm1048 = vcmask 1047559
        %v1049 = vsel %vm1048, %v1003, %v1047
        %v1050 = vsel %vm1036, %v1011, %v1007
        %v1051 = vsel %vm1038, %v1015, %v1050
        %v1052 = vsel %vm1040, %v1019, %v1051
        %v1053 = vsel %vm1042, %v1023, %v1052
        %v1054 = vsel %vm1044, %v1027, %v1053
        %v1055 = vsel %vm1046, %v1031, %v1054
        %v1056 = vsel %vm1048, %v1035, %v1055
        %vm1059 = vcmask 64512
        %v1060 = vsel %vm1059, %v1049, -inf
        %1061 = vmax.xlane.f32.xlu0 %v1060
        %v1062 = vpop.xlane.xlu0 %1061
        %v1063 = vsel %vm1059, %v1056, -inf
        %1064 = vmax.xlane.f32.xlu0 %v1063
        %v1065 = vpop.xlane.xlu0 %1064
        %v1068 = vlaneseq
        %v1069 = vshrl.u32 %v1068, 7
        %v1070 = vsub.s32 0, %v1069
        %v1071 = vrot.slane %v1062, %v1070
        %v1072 = vlaneseq
        %v1073 = vshrl.u32 %v1072, 7
        %v1074 = vsub.s32 1, %v1073
        %v1075 = vrot.slane %v1062, %v1074
        %v1076 = vlaneseq
        %v1077 = vshrl.u32 %v1076, 7
        %v1078 = vsub.s32 2, %v1077
        %v1079 = vrot.slane %v1062, %v1078
        %v1080 = vlaneseq
        %v1081 = vshrl.u32 %v1080, 7
        %v1082 = vsub.s32 3, %v1081
        %v1083 = vrot.slane %v1062, %v1082
        %v1084 = vlaneseq
        %v1085 = vshrl.u32 %v1084, 7
        %v1086 = vsub.s32 4, %v1085
        %v1087 = vrot.slane %v1062, %v1086
        %v1088 = vlaneseq
        %v1089 = vshrl.u32 %v1088, 7
        %v1090 = vsub.s32 5, %v1089
        %v1091 = vrot.slane %v1062, %v1090
        %v1092 = vlaneseq
        %v1093 = vshrl.u32 %v1092, 7
        %v1094 = vsub.s32 6, %v1093
        %v1095 = vrot.slane %v1062, %v1094
        %v1096 = vlaneseq
        %v1097 = vshrl.u32 %v1096, 7
        %v1098 = vsub.s32 7, %v1097
        %v1099 = vrot.slane %v1062, %v1098
        %v1100 = vlaneseq
        %v1101 = vshrl.u32 %v1100, 7
        %v1102 = vsub.s32 0, %v1101
        %v1103 = vrot.slane %v1065, %v1102
        %v1104 = vlaneseq
        %v1105 = vshrl.u32 %v1104, 7
        %v1106 = vsub.s32 1, %v1105
        %v1107 = vrot.slane %v1065, %v1106
        %v1108 = vlaneseq
        %v1109 = vshrl.u32 %v1108, 7
        %v1110 = vsub.s32 2, %v1109
        %v1111 = vrot.slane %v1065, %v1110
        %v1112 = vlaneseq
        %v1113 = vshrl.u32 %v1112, 7
        %v1114 = vsub.s32 3, %v1113
        %v1115 = vrot.slane %v1065, %v1114
        %v1116 = vlaneseq
        %v1117 = vshrl.u32 %v1116, 7
        %v1118 = vsub.s32 4, %v1117
        %v1119 = vrot.slane %v1065, %v1118
        %v1120 = vlaneseq
        %v1121 = vshrl.u32 %v1120, 7
        %v1122 = vsub.s32 5, %v1121
        %v1123 = vrot.slane %v1065, %v1122
        %v1124 = vlaneseq
        %v1125 = vshrl.u32 %v1124, 7
        %v1126 = vsub.s32 6, %v1125
        %v1127 = vrot.slane %v1065, %v1126
        %v1128 = vlaneseq
        %v1129 = vshrl.u32 %v1128, 7
        %v1130 = vsub.s32 7, %v1129
        %v1131 = vrot.slane %v1065, %v1130
        %v1148 = vsub.f32 %v938, %v1071
        %v1149 = vsub.f32 %v939, %v1075
        %v1150 = vsub.f32 %v940, %v1079
        %v1151 = vsub.f32 %v941, %v1083
        %v1152 = vsub.f32 %v942, %v1087
        %v1153 = vsub.f32 %v943, %v1091
        %v1154 = vsub.f32 %v944, %v1095
        %v1155 = vsub.f32 %v945, %v1099
        %v1156 = vsub.f32 %v946, %v1103
        %v1157 = vsub.f32 %v947, %v1107
        %v1158 = vsub.f32 %v948, %v1111
        %v1159 = vsub.f32 %v949, %v1115
        %v1160 = vsub.f32 %v950, %v1119
        %v1161 = vsub.f32 %v951, %v1123
        %v1162 = vsub.f32 %v952, %v1127
        %v1163 = vsub.f32 %v953, %v1131
        %v1164 = vmul.f32 %v1148, 1.442695
        %v1165 = vpow.pop %v1164
        %v1166 = vmul.f32 %v1149, 1.442695
        %v1167 = vpow.pop %v1166
        %v1168 = vmul.f32 %v1150, 1.442695
        %v1169 = vpow.pop %v1168
        %v1170 = vmul.f32 %v1151, 1.442695
        %v1171 = vpow.pop %v1170
        %v1172 = vmul.f32 %v1152, 1.442695
        %v1173 = vpow.pop %v1172
        %v1174 = vmul.f32 %v1153, 1.442695
        %v1175 = vpow.pop %v1174
        %v1176 = vmul.f32 %v1154, 1.442695
        %v1177 = vpow.pop %v1176
        %v1178 = vmul.f32 %v1155, 1.442695
        %v1179 = vpow.pop %v1178
        %v1180 = vmul.f32 %v1156, 1.442695
        %v1181 = vpow.pop %v1180
        %v1182 = vmul.f32 %v1157, 1.442695
        %v1183 = vpow.pop %v1182
        %v1184 = vmul.f32 %v1158, 1.442695
        %v1185 = vpow.pop %v1184
        %v1186 = vmul.f32 %v1159, 1.442695
        %v1187 = vpow.pop %v1186
        %v1188 = vmul.f32 %v1160, 1.442695
        %v1189 = vpow.pop %v1188
        %v1190 = vmul.f32 %v1161, 1.442695
        %v1191 = vpow.pop %v1190
        %v1192 = vmul.f32 %v1162, 1.442695
        %v1193 = vpow.pop %v1192
        %v1194 = vmul.f32 %v1163, 1.442695
        %v1195 = vpow.pop %v1194
        %1212 = vset.pattern.permute.xlu0 0
        %1213 = vperm.xlu0 %1212, %v1165
        %v1214 = vpop.permute.xlu0 %1213
        %1215 = vset.pattern.permute.xlu0 0
        %1216 = vperm.xlu0 %1215, %v1167
        %v1217 = vpop.permute.xlu0 %1216
        %1218 = vset.pattern.permute.xlu0 0
        %1219 = vperm.xlu0 %1218, %v1169
        %v1220 = vpop.permute.xlu0 %1219
        %1221 = vset.pattern.permute.xlu0 0
        %1222 = vperm.xlu0 %1221, %v1171
        %v1223 = vpop.permute.xlu0 %1222
        %1224 = vset.pattern.permute.xlu0 0
        %1225 = vperm.xlu0 %1224, %v1173
        %v1226 = vpop.permute.xlu0 %1225
        %1227 = vset.pattern.permute.xlu0 0
        %1228 = vperm.xlu0 %1227, %v1175
        %v1229 = vpop.permute.xlu0 %1228
        %1230 = vset.pattern.permute.xlu0 0
        %1231 = vperm.xlu0 %1230, %v1177
        %v1232 = vpop.permute.xlu0 %1231
        %1233 = vset.pattern.permute.xlu0 0
        %1234 = vperm.xlu0 %1233, %v1179
        %v1235 = vpop.permute.xlu0 %1234
        %1236 = vset.pattern.permute.xlu0 0
        %1237 = vperm.xlu0 %1236, %v1181
        %v1238 = vpop.permute.xlu0 %1237
        %1239 = vset.pattern.permute.xlu0 0
        %1240 = vperm.xlu0 %1239, %v1183
        %v1241 = vpop.permute.xlu0 %1240
        %1242 = vset.pattern.permute.xlu0 0
        %1243 = vperm.xlu0 %1242, %v1185
        %v1244 = vpop.permute.xlu0 %1243
        %1245 = vset.pattern.permute.xlu0 0
        %1246 = vperm.xlu0 %1245, %v1187
        %v1247 = vpop.permute.xlu0 %1246
        %1248 = vset.pattern.permute.xlu0 0
        %1249 = vperm.xlu0 %1248, %v1189
        %v1250 = vpop.permute.xlu0 %1249
        %1251 = vset.pattern.permute.xlu0 0
        %1252 = vperm.xlu0 %1251, %v1191
        %v1253 = vpop.permute.xlu0 %1252
        %1254 = vset.pattern.permute.xlu0 0
        %1255 = vperm.xlu0 %1254, %v1193
        %v1256 = vpop.permute.xlu0 %1255
        %1257 = vset.pattern.permute.xlu0 0
        %1258 = vperm.xlu0 %1257, %v1195
        %v1259 = vpop.permute.xlu0 %1258
        %v1260 = vlaneseq
        %v1261 = vshrl.u32 %v1260, 7
        %v1262 = vsub.s32 %v971, %v1261
        %v1263 = vrot.slane %v1214, %v1262
        %v1264 = vlaneseq
        %v1265 = vshrl.u32 %v1264, 7
        %v1266 = vsub.s32 %v971, %v1265
        %v1267 = vrot.slane %v1217, %v1266
        %v1268 = vlaneseq
        %v1269 = vshrl.u32 %v1268, 7
        %v1270 = vsub.s32 %v971, %v1269
        %v1271 = vrot.slane %v1220, %v1270
        %v1272 = vlaneseq
        %v1273 = vshrl.u32 %v1272, 7
        %v1274 = vsub.s32 %v971, %v1273
        %v1275 = vrot.slane %v1223, %v1274
        %v1276 = vlaneseq
        %v1277 = vshrl.u32 %v1276, 7
        %v1278 = vsub.s32 %v971, %v1277
        %v1279 = vrot.slane %v1226, %v1278
        %v1280 = vlaneseq
        %v1281 = vshrl.u32 %v1280, 7
        %v1282 = vsub.s32 %v971, %v1281
        %v1283 = vrot.slane %v1229, %v1282
        %v1284 = vlaneseq
        %v1285 = vshrl.u32 %v1284, 7
        %v1286 = vsub.s32 %v971, %v1285
        %v1287 = vrot.slane %v1232, %v1286
        %v1288 = vlaneseq
        %v1289 = vshrl.u32 %v1288, 7
        %v1290 = vsub.s32 %v971, %v1289
        %v1291 = vrot.slane %v1235, %v1290
        %v1292 = vlaneseq
        %v1293 = vshrl.u32 %v1292, 7
        %v1294 = vsub.s32 %v971, %v1293
        %v1295 = vrot.slane %v1238, %v1294
        %v1296 = vlaneseq
        %v1297 = vshrl.u32 %v1296, 7
        %v1298 = vsub.s32 %v971, %v1297
        %v1299 = vrot.slane %v1241, %v1298
        %v1300 = vlaneseq
        %v1301 = vshrl.u32 %v1300, 7
        %v1302 = vsub.s32 %v971, %v1301
        %v1303 = vrot.slane %v1244, %v1302
        %v1304 = vlaneseq
        %v1305 = vshrl.u32 %v1304, 7
        %v1306 = vsub.s32 %v971, %v1305
        %v1307 = vrot.slane %v1247, %v1306
        %v1308 = vlaneseq
        %v1309 = vshrl.u32 %v1308, 7
        %v1310 = vsub.s32 %v971, %v1309
        %v1311 = vrot.slane %v1250, %v1310
        %v1312 = vlaneseq
        %v1313 = vshrl.u32 %v1312, 7
        %v1314 = vsub.s32 %v971, %v1313
        %v1315 = vrot.slane %v1253, %v1314
        %v1316 = vlaneseq
        %v1317 = vshrl.u32 %v1316, 7
        %v1318 = vsub.s32 %v971, %v1317
        %v1319 = vrot.slane %v1256, %v1318
        %v1320 = vlaneseq
        %v1321 = vshrl.u32 %v1320, 7
        %v1322 = vsub.s32 %v971, %v1321
        %v1323 = vrot.slane %v1259, %v1322
        %v1324 = vsel %vm1036, %v1267, %v1263
        %v1325 = vsel %vm1038, %v1271, %v1324
        %v1326 = vsel %vm1040, %v1275, %v1325
        %v1327 = vsel %vm1042, %v1279, %v1326
        %v1328 = vsel %vm1044, %v1283, %v1327
        %v1329 = vsel %vm1046, %v1287, %v1328
        %v1330 = vsel %vm1048, %v1291, %v1329
        %v1331 = vsel %vm1036, %v1299, %v1295
        %v1332 = vsel %vm1038, %v1303, %v1331
        %v1333 = vsel %vm1040, %v1307, %v1332
        %v1334 = vsel %vm1042, %v1311, %v1333
        %v1335 = vsel %vm1044, %v1315, %v1334
        %v1336 = vsel %vm1046, %v1319, %v1335
        %v1337 = vsel %vm1048, %v1323, %v1336
        %v1340 = vsel %vm1059, %v1330, 0.0
        %1341 = vadd.xlane.f32.xlu0 %v1340
        %v1342 = vpop.xlane.xlu0 %1341
        %v1343 = vsel %vm1059, %v1337, 0.0
        %1344 = vadd.xlane.f32.xlu0 %v1343
        %v1345 = vpop.xlane.xlu0 %1344
        %v1348 = vlaneseq
        %v1349 = vshrl.u32 %v1348, 7
        %v1350 = vsub.s32 0, %v1349
        %v1351 = vrot.slane %v1342, %v1350
        %v1352 = vlaneseq
        %v1353 = vshrl.u32 %v1352, 7
        %v1354 = vsub.s32 1, %v1353
        %v1355 = vrot.slane %v1342, %v1354
        %v1356 = vlaneseq
        %v1357 = vshrl.u32 %v1356, 7
        %v1358 = vsub.s32 2, %v1357
        %v1359 = vrot.slane %v1342, %v1358
        %v1360 = vlaneseq
        %v1361 = vshrl.u32 %v1360, 7
        %v1362 = vsub.s32 3, %v1361
        %v1363 = vrot.slane %v1342, %v1362
        %v1364 = vlaneseq
        %v1365 = vshrl.u32 %v1364, 7
        %v1366 = vsub.s32 4, %v1365
        %v1367 = vrot.slane %v1342, %v1366
        %v1368 = vlaneseq
        %v1369 = vshrl.u32 %v1368, 7
        %v1370 = vsub.s32 5, %v1369
        %v1371 = vrot.slane %v1342, %v1370
        %v1372 = vlaneseq
        %v1373 = vshrl.u32 %v1372, 7
        %v1374 = vsub.s32 6, %v1373
        %v1375 = vrot.slane %v1342, %v1374
        %v1376 = vlaneseq
        %v1377 = vshrl.u32 %v1376, 7
        %v1378 = vsub.s32 7, %v1377
        %v1379 = vrot.slane %v1342, %v1378
        %v1380 = vlaneseq
        %v1381 = vshrl.u32 %v1380, 7
        %v1382 = vsub.s32 0, %v1381
        %v1383 = vrot.slane %v1345, %v1382
        %v1384 = vlaneseq
        %v1385 = vshrl.u32 %v1384, 7
        %v1386 = vsub.s32 1, %v1385
        %v1387 = vrot.slane %v1345, %v1386
        %v1388 = vlaneseq
        %v1389 = vshrl.u32 %v1388, 7
        %v1390 = vsub.s32 2, %v1389
        %v1391 = vrot.slane %v1345, %v1390
        %v1392 = vlaneseq
        %v1393 = vshrl.u32 %v1392, 7
        %v1394 = vsub.s32 3, %v1393
        %v1395 = vrot.slane %v1345, %v1394
        %v1396 = vlaneseq
        %v1397 = vshrl.u32 %v1396, 7
        %v1398 = vsub.s32 4, %v1397
        %v1399 = vrot.slane %v1345, %v1398
        %v1400 = vlaneseq
        %v1401 = vshrl.u32 %v1400, 7
        %v1402 = vsub.s32 5, %v1401
        %v1403 = vrot.slane %v1345, %v1402
        %v1404 = vlaneseq
        %v1405 = vshrl.u32 %v1404, 7
        %v1406 = vsub.s32 6, %v1405
        %v1407 = vrot.slane %v1345, %v1406
        %v1408 = vlaneseq
        %v1409 = vshrl.u32 %v1408, 7
        %v1410 = vsub.s32 7, %v1409
        %v1411 = vrot.slane %v1345, %v1410
        %v1428 = vrcp.pop %v1351
        %v1429 = vmul.f32 %v1165, %v1428
        %v1430 = vrcp.pop %v1355
        %v1431 = vmul.f32 %v1167, %v1430
        %v1432 = vrcp.pop %v1359
        %v1433 = vmul.f32 %v1169, %v1432
        %v1434 = vrcp.pop %v1363
        %v1435 = vmul.f32 %v1171, %v1434
        %v1436 = vrcp.pop %v1367
        %v1437 = vmul.f32 %v1173, %v1436
        %v1438 = vrcp.pop %v1371
        %v1439 = vmul.f32 %v1175, %v1438
        %v1440 = vrcp.pop %v1375
        %v1441 = vmul.f32 %v1177, %v1440
        %v1442 = vrcp.pop %v1379
        %v1443 = vmul.f32 %v1179, %v1442
        %v1444 = vrcp.pop %v1383
        %v1445 = vmul.f32 %v1181, %v1444
        %v1446 = vrcp.pop %v1387
        %v1447 = vmul.f32 %v1183, %v1446
        %v1448 = vrcp.pop %v1391
        %v1449 = vmul.f32 %v1185, %v1448
        %v1450 = vrcp.pop %v1395
        %v1451 = vmul.f32 %v1187, %v1450
        %v1452 = vrcp.pop %v1399
        %v1453 = vmul.f32 %v1189, %v1452
        %v1454 = vrcp.pop %v1403
        %v1455 = vmul.f32 %v1191, %v1454
        %v1456 = vrcp.pop %v1407
        %v1457 = vmul.f32 %v1193, %v1456
        %v1458 = vrcp.pop %v1411
        %v1459 = vmul.f32 %v1195, %v1458
        %1461 = vset.pattern.permute.xlu0 0
        %1462 = vperm.xlu0 %1461, %v1429
        %v1463 = vpop.permute.xlu0 %1462
        %1466 = vset.pattern.permute.xlu0 0
        %1467 = vperm.xlu0 %1466, %v1431
        %v1468 = vpop.permute.xlu0 %1467
        %1471 = vset.pattern.permute.xlu0 0
        %1472 = vperm.xlu0 %1471, %v1433
        %v1473 = vpop.permute.xlu0 %1472
        %1476 = vset.pattern.permute.xlu0 0
        %1477 = vperm.xlu0 %1476, %v1435
        %v1478 = vpop.permute.xlu0 %1477
        %1481 = vset.pattern.permute.xlu0 0
        %1482 = vperm.xlu0 %1481, %v1437
        %v1483 = vpop.permute.xlu0 %1482
        %1486 = vset.pattern.permute.xlu0 0
        %1487 = vperm.xlu0 %1486, %v1439
        %v1488 = vpop.permute.xlu0 %1487
        %1491 = vset.pattern.permute.xlu0 0
        %1492 = vperm.xlu0 %1491, %v1441
        %v1493 = vpop.permute.xlu0 %1492
        %1496 = vset.pattern.permute.xlu0 0
        %1497 = vperm.xlu0 %1496, %v1443
        %v1498 = vpop.permute.xlu0 %1497
        %1501 = vset.pattern.permute.xlu0 0
        %1502 = vperm.xlu0 %1501, %v1445
        %v1503 = vpop.permute.xlu0 %1502
        %1506 = vset.pattern.permute.xlu0 0
        %1507 = vperm.xlu0 %1506, %v1447
        %v1508 = vpop.permute.xlu0 %1507
        %1511 = vset.pattern.permute.xlu0 0
        %1512 = vperm.xlu0 %1511, %v1449
        %v1513 = vpop.permute.xlu0 %1512
        %1516 = vset.pattern.permute.xlu0 0
        %1517 = vperm.xlu0 %1516, %v1451
        %v1518 = vpop.permute.xlu0 %1517
        %1521 = vset.pattern.permute.xlu0 0
        %1522 = vperm.xlu0 %1521, %v1453
        %v1523 = vpop.permute.xlu0 %1522
        %1526 = vset.pattern.permute.xlu0 0
        %1527 = vperm.xlu0 %1526, %v1455
        %v1528 = vpop.permute.xlu0 %1527
        %1531 = vset.pattern.permute.xlu0 0
        %1532 = vperm.xlu0 %1531, %v1457
        %v1533 = vpop.permute.xlu0 %1532
        %1536 = vset.pattern.permute.xlu0 0
        %1537 = vperm.xlu0 %1536, %v1459
        %v1538 = vpop.permute.xlu0 %1537
        %v1540 = vmul.f32 %v1463, %v397
        %v1541 = vmul.f32 %v1468, %v398
        %v1542 = vmul.f32 %v1473, %v399
        %v1543 = vmul.f32 %v1478, %v400
        %v1544 = vmul.f32 %v1483, %v401
        %v1545 = vmul.f32 %v1488, %v402
        %v1546 = vmul.f32 %v1493, %v403
        %v1547 = vmul.f32 %v1498, %v404
        %v1548 = vmul.f32 %v1503, %v405
        %v1549 = vmul.f32 %v1508, %v406
        %v1550 = vmul.f32 %v1513, %v407
        %v1551 = vmul.f32 %v1518, %v408
        %v1552 = vmul.f32 %v1523, %v409
        %v1553 = vmul.f32 %v1528, %v410
        %v1554 = vmul.f32 %v1533, %v411
        %v1555 = vmul.f32 %v1538, %v412
        %v1556 = vrot.slane %v1540, 4
        %v1557 = vadd.f32 %v1540, %v1556
        %v1558 = vrot.slane %v1557, 2
        %v1559 = vadd.f32 %v1557, %v1558
        %v1560 = vrot.slane %v1559, 1
        %v1561 = vadd.f32 %v1559, %v1560
        %v1562 = vrot.slane %v1541, 4
        %v1563 = vadd.f32 %v1541, %v1562
        %v1564 = vrot.slane %v1563, 2
        %v1565 = vadd.f32 %v1563, %v1564
        %v1566 = vrot.slane %v1565, 1
        %v1567 = vadd.f32 %v1565, %v1566
        %v1568 = vrot.slane %v1542, 4
        %v1569 = vadd.f32 %v1542, %v1568
        %v1570 = vrot.slane %v1569, 2
        %v1571 = vadd.f32 %v1569, %v1570
        %v1572 = vrot.slane %v1571, 1
        %v1573 = vadd.f32 %v1571, %v1572
        %v1574 = vrot.slane %v1543, 4
        %v1575 = vadd.f32 %v1543, %v1574
        %v1576 = vrot.slane %v1575, 2
        %v1577 = vadd.f32 %v1575, %v1576
        %v1578 = vrot.slane %v1577, 1
        %v1579 = vadd.f32 %v1577, %v1578
        %v1580 = vrot.slane %v1544, 4
        %v1581 = vadd.f32 %v1544, %v1580
        %v1582 = vrot.slane %v1581, 2
        %v1583 = vadd.f32 %v1581, %v1582
        %v1584 = vrot.slane %v1583, 1
        %v1585 = vadd.f32 %v1583, %v1584
        %v1586 = vrot.slane %v1545, 4
        %v1587 = vadd.f32 %v1545, %v1586
        %v1588 = vrot.slane %v1587, 2
        %v1589 = vadd.f32 %v1587, %v1588
        %v1590 = vrot.slane %v1589, 1
        %v1591 = vadd.f32 %v1589, %v1590
        %v1592 = vrot.slane %v1546, 4
        %v1593 = vadd.f32 %v1546, %v1592
        %v1594 = vrot.slane %v1593, 2
        %v1595 = vadd.f32 %v1593, %v1594
        %v1596 = vrot.slane %v1595, 1
        %v1597 = vadd.f32 %v1595, %v1596
        %v1598 = vrot.slane %v1547, 4
        %v1599 = vadd.f32 %v1547, %v1598
        %v1600 = vrot.slane %v1599, 2
        %v1601 = vadd.f32 %v1599, %v1600
        %v1602 = vrot.slane %v1601, 1
        %v1603 = vadd.f32 %v1601, %v1602
        %v1604 = vrot.slane %v1548, 4
        %v1605 = vadd.f32 %v1548, %v1604
        %v1606 = vrot.slane %v1605, 2
        %v1607 = vadd.f32 %v1605, %v1606
        %v1608 = vrot.slane %v1607, 1
        %v1609 = vadd.f32 %v1607, %v1608
        %v1610 = vrot.slane %v1549, 4
        %v1611 = vadd.f32 %v1549, %v1610
        %v1612 = vrot.slane %v1611, 2
        %v1613 = vadd.f32 %v1611, %v1612
        %v1614 = vrot.slane %v1613, 1
        %v1615 = vadd.f32 %v1613, %v1614
        %v1616 = vrot.slane %v1550, 4
        %v1617 = vadd.f32 %v1550, %v1616
        %v1618 = vrot.slane %v1617, 2
        %v1619 = vadd.f32 %v1617, %v1618
        %v1620 = vrot.slane %v1619, 1
        %v1621 = vadd.f32 %v1619, %v1620
        %v1622 = vrot.slane %v1551, 4
        %v1623 = vadd.f32 %v1551, %v1622
        %v1624 = vrot.slane %v1623, 2
        %v1625 = vadd.f32 %v1623, %v1624
        %v1626 = vrot.slane %v1625, 1
        %v1627 = vadd.f32 %v1625, %v1626
        %v1628 = vrot.slane %v1552, 4
        %v1629 = vadd.f32 %v1552, %v1628
        %v1630 = vrot.slane %v1629, 2
        %v1631 = vadd.f32 %v1629, %v1630
        %v1632 = vrot.slane %v1631, 1
        %v1633 = vadd.f32 %v1631, %v1632
        %v1634 = vrot.slane %v1553, 4
        %v1635 = vadd.f32 %v1553, %v1634
        %v1636 = vrot.slane %v1635, 2
        %v1637 = vadd.f32 %v1635, %v1636
        %v1638 = vrot.slane %v1637, 1
        %v1639 = vadd.f32 %v1637, %v1638
        %v1640 = vrot.slane %v1554, 4
        %v1641 = vadd.f32 %v1554, %v1640
        %v1642 = vrot.slane %v1641, 2
        %v1643 = vadd.f32 %v1641, %v1642
        %v1644 = vrot.slane %v1643, 1
        %v1645 = vadd.f32 %v1643, %v1644
        %v1646 = vrot.slane %v1555, 4
        %v1647 = vadd.f32 %v1555, %v1646
        %v1648 = vrot.slane %v1647, 2
        %v1649 = vadd.f32 %v1647, %v1648
        %v1650 = vrot.slane %v1649, 1
        %v1651 = vadd.f32 %v1649, %v1650
        %v1652 = vmul.f32 %v1561, %v1561
        %v1653 = vmul.f32 %v1567, %v1567
        %v1654 = vmul.f32 %v1573, %v1573
        %v1655 = vmul.f32 %v1579, %v1579
        %v1656 = vmul.f32 %v1585, %v1585
        %v1657 = vmul.f32 %v1591, %v1591
        %v1658 = vmul.f32 %v1597, %v1597
        %v1659 = vmul.f32 %v1603, %v1603
        %v1660 = vmul.f32 %v1609, %v1609
        %v1661 = vmul.f32 %v1615, %v1615
        %v1662 = vmul.f32 %v1621, %v1621
        %v1663 = vmul.f32 %v1627, %v1627
        %v1664 = vmul.f32 %v1633, %v1633
        %v1665 = vmul.f32 %v1639, %v1639
        %v1666 = vmul.f32 %v1645, %v1645
        %v1667 = vmul.f32 %v1651, %v1651
        %v1684 = vsel %vm1036, %v1653, %v1652
        %v1685 = vsel %vm1038, %v1654, %v1684
        %v1686 = vsel %vm1040, %v1655, %v1685
        %v1687 = vsel %vm1042, %v1656, %v1686
        %v1688 = vsel %vm1044, %v1657, %v1687
        %v1689 = vsel %vm1046, %v1658, %v1688
        %v1690 = vsel %vm1048, %v1659, %v1689
        %v1691 = vsel %vm1036, %v1661, %v1660
        %v1692 = vsel %vm1038, %v1662, %v1691
        %v1693 = vsel %vm1040, %v1663, %v1692
        %v1694 = vsel %vm1042, %v1664, %v1693
        %v1695 = vsel %vm1044, %v1665, %v1694
        %v1696 = vsel %vm1046, %v1666, %v1695
        %v1697 = vsel %vm1048, %v1667, %v1696
        %1700 = vadd.xlane.f32.xlu0 %v1690
        %v1701 = vpop.xlane.xlu0 %1700
        %1702 = vadd.xlane.f32.xlu0 %v1697
        %v1703 = vpop.xlane.xlu0 %1702
        %v1704 = vrsqrt.pop %v1701
        %v1705 = vmul.f32 %v1701, %v1704
        %vm1706 = vcmp.eq.f32.partialorder %v1701, inf
        %v1707 = vsel %vm1706, %v1701, %v1705
        %vm1708 = vcmp.eq.f32.partialorder %v1701, 0.0
        %v1709 = vand.u32 %v1701, 2147483648
        %v1710 = vsel %vm1708, %v1709, %v1707
        %v1711 = vrsqrt.pop %v1703
        %v1712 = vmul.f32 %v1703, %v1711
        %vm1713 = vcmp.eq.f32.partialorder %v1703, inf
        %v1714 = vsel %vm1713, %v1703, %v1712
        %vm1715 = vcmp.eq.f32.partialorder %v1703, 0.0
        %v1716 = vand.u32 %v1703, 2147483648
        %v1717 = vsel %vm1715, %v1716, %v1714
        %v1718 = vadd.f32 %v1710, 1e-08
        %v1719 = vadd.f32 %v1717, 1e-08
        %v1722 = vrot.slane %v1718, 1
        %v1723 = vrot.slane %v1718, 2
        %v1724 = vrot.slane %v1718, 3
        %v1725 = vrot.slane %v1718, 4
        %v1726 = vrot.slane %v1718, 5
        %v1727 = vrot.slane %v1718, 6
        %v1728 = vrot.slane %v1718, 7
        %v1729 = vrot.slane %v1719, 1
        %v1730 = vrot.slane %v1719, 2
        %v1731 = vrot.slane %v1719, 3
        %v1732 = vrot.slane %v1719, 4
        %v1733 = vrot.slane %v1719, 5
        %v1734 = vrot.slane %v1719, 6
        %v1735 = vrot.slane %v1719, 7
        %v1752 = vrcp.pop %v1718
        %v1753 = vmul.f32 %v1561, %v1752
        %v1754 = vrcp.pop %v1722
        %v1755 = vmul.f32 %v1567, %v1754
        %v1756 = vrcp.pop %v1723
        %v1757 = vmul.f32 %v1573, %v1756
        %v1758 = vrcp.pop %v1724
        %v1759 = vmul.f32 %v1579, %v1758
        %v1760 = vrcp.pop %v1725
        %v1761 = vmul.f32 %v1585, %v1760
        %v1762 = vrcp.pop %v1726
        %v1763 = vmul.f32 %v1591, %v1762
        %v1764 = vrcp.pop %v1727
        %v1765 = vmul.f32 %v1597, %v1764
        %v1766 = vrcp.pop %v1728
        %v1767 = vmul.f32 %v1603, %v1766
        %v1768 = vrcp.pop %v1719
        %v1769 = vmul.f32 %v1609, %v1768
        %v1770 = vrcp.pop %v1729
        %v1771 = vmul.f32 %v1615, %v1770
        %v1772 = vrcp.pop %v1730
        %v1773 = vmul.f32 %v1621, %v1772
        %v1774 = vrcp.pop %v1731
        %v1775 = vmul.f32 %v1627, %v1774
        %v1776 = vrcp.pop %v1732
        %v1777 = vmul.f32 %v1633, %v1776
        %v1778 = vrcp.pop %v1733
        %v1779 = vmul.f32 %v1639, %v1778
        %v1780 = vrcp.pop %v1734
        %v1781 = vmul.f32 %v1645, %v1780
        %v1782 = vrcp.pop %v1735
        %v1783 = vmul.f32 %v1651, %v1782
        %v1800 = vrot.slane %v1755, 7
        %v1801 = vsel %vm1036, %v1800, %v1753
        %v1802 = vrot.slane %v1757, 6
        %v1803 = vsel %vm1038, %v1802, %v1801
        %v1804 = vrot.slane %v1759, 5
        %v1805 = vsel %vm1040, %v1804, %v1803
        %v1806 = vrot.slane %v1761, 4
        %v1807 = vsel %vm1042, %v1806, %v1805
        %v1808 = vrot.slane %v1763, 3
        %v1809 = vsel %vm1044, %v1808, %v1807
        %v1810 = vrot.slane %v1765, 2
        %v1811 = vsel %vm1046, %v1810, %v1809
        %v1812 = vrot.slane %v1767, 1
        %v1813 = vsel %vm1048, %v1812, %v1811
        %v1814 = vrot.slane %v1771, 7
        %v1815 = vsel %vm1036, %v1814, %v1769
        %v1816 = vrot.slane %v1773, 6
        %v1817 = vsel %vm1038, %v1816, %v1815
        %v1818 = vrot.slane %v1775, 5
        %v1819 = vsel %vm1040, %v1818, %v1817
        %v1820 = vrot.slane %v1777, 4
        %v1821 = vsel %vm1042, %v1820, %v1819
        %v1822 = vrot.slane %v1779, 3
        %v1823 = vsel %vm1044, %v1822, %v1821
        %v1824 = vrot.slane %v1781, 2
        %v1825 = vsel %vm1046, %v1824, %v1823
        %v1826 = vrot.slane %v1783, 1
        %v1827 = vsel %vm1048, %v1826, %v1825
        %1830 = vst [vmem:[%s393] sm:$0xff] %v1813
        %1831 = vst [vmem:[%s393 + $0x8] sm:$0xff] %v1827
        %s1832 = sand.u32 %s216, 1
        %s1833 = scalar_lea.sflag [#allocation5], %s1832
        %s1834 = sand.u32 %s216, 1
        %s1835 = smul.addr %s1834, 16
        %s1836 = scalar_lea.vmem [#allocation11], %s1835
        // Predicated region
        $region69: #{tpu_custom_call.1} parent=51 // pred_check
          %p1837 = pneg %p226
        $region70: #{tpu_custom_call.1} parent=51 // pred_check_branch
          %1839 = sbr.rel (%p1837) target = $region72
        $region71: #{tpu_custom_call.1} parent=51 // pred_region
          %s1840 = smul.u32 2, %s30
          %s1842 = ssub.s32 256, 256
          %1843 = vsyncadd %s1833, %s1842
          %s1844 = smul.addr %s1840, 128
          %s1845 = scalar_lea.hbm %s8, %s1844
          %s1846 = sshll.u32 %s1836, 4
          %s1847 = int_to_ptr.vmem [resolvable:$true] %s1846
          %1852 = dma.vmem_to_hbm [thread:$0]  %s1847, 256, %s1845, %s1833, 128, 128, 8
        $region72: #{tpu_custom_call.1} parent=51 // pred_fallthru
          _
      $region52: #{tpu_custom_call.1} parent=5 // pred_fallthru
        _
      %p1853 = scmp.le.s32.totalorder 2, %s25
      // Predicated region
      $region73: #{tpu_custom_call.1} parent=5 // pred_check
        %p1854 = pneg %p1853
      $region74: #{tpu_custom_call.1} parent=5 // pred_check_branch
        %1856 = sbr.rel (%p1854) target = $region76
      $region75: #{tpu_custom_call.1} parent=5 // pred_region
        %s1857 = ssub.s32 %s25, 2
        // Predicated region
        $region77: #{tpu_custom_call.1} parent=75 // pred_check
          %p1858 = pneg %p232
        $region78: #{tpu_custom_call.1} parent=75 // pred_check_branch
          %1860 = sbr.rel (%p1858) target = $region80
        $region79: #{tpu_custom_call.1} parent=75 // pred_region
          %s1861 = sand.u32 %s217, 1
          %s1862 = scalar_lea.sflag [#allocation5], %s1861
          %s1863 = sand.u32 %s217, 1
          %s1864 = smul.addr %s1863, 16
          %s1865 = scalar_lea.vmem [#allocation11], %s1864
          %1866 = dma.done %s1862, 256
        $region80: #{tpu_custom_call.1} parent=75 // pred_fallthru
          _
      $region76: #{tpu_custom_call.1} parent=5 // pred_fallthru
        _
    $region6: #{tpu_custom_call.1} parent=1 // loop_footer
      %s29 = sadd.s32 1, %s25
    $region7: #{tpu_custom_call.1} parent=1 // loop_footer_branch
      %24 = sbr.rel target = $region3
    $region8: #{tpu_custom_call.1} parent=1 // loop_exit
      _
    %1867 = vsyncpa [#allocation4], 1
    %s1868 = scalar_lea.sflag [#allocation4], 1
    %1869 = vsyncpa %s1868, 1
    %1870 = vsyncpa [#allocation7], 1
    %s1871 = scalar_lea.sflag [#allocation7], 1
    %1872 = vsyncpa %s1871, 1
    %1873 = vsyncpa [#allocation10], 1
    %1874 = vsyncpa [#allocation5], 1
    %s1875 = scalar_lea.sflag [#allocation5], 1
    %1876 = vsyncpa %s1875, 1

</llo_original>
